<compile_context>
chip_gen: v5e
topology: v5e:2x2
jax: 0.10.0
libtpu: 0.0.40
codegen_flags: <defaults>
</compile_context>

<pallas_src>
import functools
import math

import jax
import jax.numpy as jnp
from jax import lax
from jax.experimental import pallas as pl
from jax.experimental.pallas import tpu as pltpu


def _round_up(x, m):
    return (x + m - 1) // m * m


# ----------------------------- Pallas kernel ------------------------------- #
def _ban_kernel(v_ref, q_ref, wv_all_ref, bv_all_ref, wq_all_ref, bq_all_ref,
                hmat_ref, pool_ref, misc_ref, *out_refs,
                with_att, bcast_on_q):
    """Per-grid-step body.

    v_ref:  (Bt, Nvp, Dvp) bf16          q_ref:  (Bt, Nqp, Dqp) bf16
    wv_all: (Dvp, 2Kp) bf16 = [wv|wvv]   wq_all: (Dqp, 2Kp) bf16 = [wq|wvq]
    bv_all: (Nvp, 2Kp) bf16 (PE folded)  bq_all: (Nqp, 2Kp) bf16 (PE folded)
    hmat:   (h_out, Kp) bf16 (h_bias rides the spare "ones" K column)
    pool:   (Kp, Hp)    bf16 (AvgPool*k group-sum with BN scale folded in)
    misc:   (1, Kp+Hp)  f32  = [h_mat.sum(0) | bn_shift]
    out_refs = (att_ref?, logits_ref):
      att_ref:    (Bt, h_out*Nsp, Nlp) bf16   (Ns = broadcast side, Nl = lanes)
      logits_ref: (Bt, 1, Hp) f32
    """
    f32 = jnp.float32
    bf16 = jnp.bfloat16
    h_out, Kp = hmat_ref.shape
    Bt, Nvp, Dvp = v_ref.shape
    Nqp, Dqp = q_ref.shape[1], q_ref.shape[2]

    att_ref = out_refs[0] if with_att else None
    logits_ref = out_refs[-1]

    # Fused FCNets: all Bt samples share one (Bt*N, D) x (D, 2Kp) MXU matmul
    # per modality (bf16 operands, f32 accumulation), then the per-row
    # (PE-folded) bias and ReLU.  Padded token rows have an all-zero bias, so
    # padded activations are exactly 0 after ReLU.
    v_all = jnp.dot(v_ref[...].reshape(Bt * Nvp, Dvp), wv_all_ref[...],
                    preferred_element_type=f32).reshape(Bt, Nvp, 2 * Kp)
    v_all = jnp.maximum(v_all + bv_all_ref[...][None], 0.0)   # [v_ | vv_]
    q_all = jnp.dot(q_ref[...].reshape(Bt * Nqp, Dqp), wq_all_ref[...],
                    preferred_element_type=f32).reshape(Bt, Nqp, 2 * Kp)
    q_all = jnp.maximum(q_all + bq_all_ref[...][None], 0.0)   # [q_ | vq_]

    hmat = hmat_ref[...].astype(f32)
    pool = pool_ref[...].astype(f32)
    hmat_sum = misc_ref[:, :Kp]          # (1, Kp) f32, includes the bias column
    bn_shift = misc_ref[:, Kp:]          # (1, Hp) f32

    for b in range(Bt):                  # static unroll over the batch tile
        v_, vv_ = v_all[b, :, :Kp], v_all[b, :, Kp:]
        q_, vq_ = q_all[b, :, :Kp], q_all[b, :, Kp:]
        # Broadcast h_mat onto the smaller token side; the larger side stays on
        # lanes so the att store is a lane-dense, unmasked vst.
        if bcast_on_q:
            s_, l_, s2_, l2_ = q_, v_, vq_, vv_
        else:
            s_, l_, s2_, l2_ = v_, q_, vv_, vq_
        ns = s_.shape[0]

        if with_att:
            # att[h*Ns + s, l] = sum_k hmat[h,k] s_[s,k] l_[l,k]; h_bias rides
            # the folded "ones" K column, so no bias add on the store path.
            lhs = (hmat[:, None, :] * s_[None, :, :]).astype(bf16)
            att = lax.dot_general(lhs.reshape(h_out * ns, Kp), l_.astype(bf16),
                                  (((1,), (1,)), ((), ())),
                                  preferred_element_type=f32)
            att_ref[b, :, :] = att.astype(att_ref.dtype)

        # Head-summed attention directly from h_mat.sum(0) (no re-read of att).
        a_sum = lax.dot_general(s_ * hmat_sum, l_, (((1,), (1,)), ((), ())),
                                preferred_element_type=f32)         # (Ns, Nl)
        # attention pooling: raw[k] = sum_{s,l} s2_[s,k] a_sum[s,l] l2_[l,k]
        t = jnp.dot(a_sum, l2_, preferred_element_type=f32)          # (Ns, Kp)
        raw = jnp.sum(s2_ * t, axis=0, keepdims=True)                # (1, Kp)
        pooled = jnp.dot(raw, pool, preferred_element_type=f32)      # (1, Hp)
        logits_ref[b, :, :] = pooled + bn_shift


# ------------------------ kernel-parameter preparation ---------------------- #
def _prepare_kernel_params(p, Nv, Nq, h_dim, h_out, k, bcast_on_q):
    v_dim = p["wv"].shape[0]
    q_dim = p["wq"].shape[0]
    K = h_dim * k
    Kp = _round_up(K + 1, 128)           # +1: spare column carries folded h_bias
    Dvp = _round_up(v_dim, 128)
    Dqp = _round_up(q_dim, 128)
    Hp = _round_up(h_dim, 128)
    if bcast_on_q:                       # q is the broadcast side, v is lanes
        Nvp, Nqp = _round_up(Nv, 128), _round_up(Nq, 8)
    else:                                # v is the broadcast side, q is lanes
        Nvp, Nqp = _round_up(Nv, 8), _round_up(Nq, 128)
    bf16 = jnp.bfloat16

    def pad2(a, r, c):
        return jnp.pad(a, ((0, r - a.shape[0]), (0, c - a.shape[1])))

    # Fold PE through the (linear) weights into position-dependent bias rows.
    bv_pe = p["pe_v"][:Nv] @ p["wv"] + p["bv"]            # (Nv, K)
    bq_pe = p["pe_q"][:Nq] @ p["wq"] + p["bq"]            # (Nq, K)
    bvv = jnp.broadcast_to(p["bvv"], (Nv, K))
    bvq = jnp.broadcast_to(p["bvq"], (Nq, K))

    # Spare K column (index K): constant 1 for every *real* token row of the
    # v_/q_ halves; h_mat carries h_bias there, so the attention bias rides the
    # MXU matmul.  Padded rows keep 0, so padded att entries are exactly 0.
    bv_first = pad2(bv_pe, Nvp, Kp).at[:Nv, K].set(1.0)
    bq_first = pad2(bq_pe, Nqp, Kp).at[:Nq, K].set(1.0)
    bv_all = jnp.concatenate([bv_first, pad2(bvv, Nvp, Kp)], 1)   # (Nvp, 2Kp)
    bq_all = jnp.concatenate([bq_first, pad2(bvq, Nqp, Kp)], 1)   # (Nqp, 2Kp)

    wv_all = jnp.concatenate([pad2(p["wv"], Dvp, Kp), pad2(p["wvv"], Dvp, Kp)], 1)
    wq_all = jnp.concatenate([pad2(p["wq"], Dqp, Kp), pad2(p["wvq"], Dqp, Kp)], 1)

    h_mat = pad2(p["h_mat"], h_out, Kp).at[:, K].set(p["h_bias"].reshape(h_out))
    hmat_sum = jnp.sum(h_mat, axis=0, keepdims=True)      # (1, Kp) incl. bias col

    # AvgPool1d(k, stride=k) * k  -> group-sum matrix, with BN scale folded in.
    pool = jnp.repeat(jnp.eye(h_dim, dtype=jnp.float32), k, axis=0)   # (K, h_dim)
    pool = pad2(pool * p["bn_scale"], Kp, Hp)
    bn_shift = pad2(p["bn_shift"], 1, Hp)
    misc = jnp.concatenate([hmat_sum, bn_shift], axis=1).astype(jnp.float32)

    dims = (Nvp, Nqp, Dvp, Dqp, Kp, Hp)
    tensors = (wv_all.astype(bf16), bv_all.astype(bf16),
               wq_all.astype(bf16), bq_all.astype(bf16),
               h_mat.astype(bf16), pool.astype(bf16), misc)
    return dims, tensors


# ------------------------------ sizing helpers ------------------------------ #
def _vmem_limit_bytes():
    cap = 64 * 1024 * 1024
    try:
        info = pltpu.get_tpu_info()
        cap = int(getattr(info, "vmem_capacity_bytes", cap))
    except Exception:
        pass
    # leave headroom for compiler scratch (v7x: 64 MiB total, v5e/v6e: 128 MiB)
    return min(cap * 3 // 4, 112 * 1024 * 1024)


def _choose_block_b(B, Nvp, Nqp, Dvp, Dqp, Kp, Hp, h_out, Nsp, Nlp,
                    return_att, vmem_limit):
    # Rough VMEM model: double-buffered bf16 constants + per-sample working set.
    const = 2 * 2 * ((Dvp + Dqp + Nvp + Nqp) * 2 * Kp + h_out * Kp + Kp * Hp) \
        + 2 * 4 * (Kp + Hp)
    per_sample = (2 * 2 * (Nvp * Dvp + Nqp * Dqp)        # dbl-buffered bf16 inputs
                  + 4 * (Nvp + Nqp) * 2 * Kp             # f32 activations
                  + 4 * Nsp * (Nlp + Kp)                 # a_sum + t
                  + 2 * 4 * Hp)                          # dbl-buffered logits
    if return_att:
        per_sample += (2 * h_out * Nsp * Kp              # bf16 broadcast lhs
                       + 4 * h_out * Nsp * Nlp           # f32 att
                       + 2 * 2 * h_out * Nsp * Nlp)      # dbl-buffered bf16 out
    budget = int(vmem_limit * 0.8)
    feasible = [bt for bt in range(1, min(B, 8) + 1)
                if const + bt * per_sample <= budget]
    if not feasible:
        return 1

    def score(bt):
        steps = -(-B // bt)
        # prefer: even #steps (2-TC v7x balance), exact divisibility, larger tile
        return (steps % 2 == 0, B % bt == 0, bt)

    return max(feasible, key=score)


# ------------------------------- wrapper ------------------------------------ #
def ban_layer_forward(v, q, params, h_dim, h_out, k, *,
                      return_att=True, block_b=None):
    B, Nv, Dv = v.shape
    _, Nq, Dq = q.shape
    bcast_on_q = Nq < Nv        # broadcast h_mat onto the smaller token side
    (Nvp, Nqp, Dvp, Dqp, Kp, Hp), ptensors = _prepare_kernel_params(
        params, Nv, Nq, h_dim, h_out, k, bcast_on_q)
    Nsp, Nlp = (Nqp, Nvp) if bcast_on_q else (Nvp, Nqp)

    vmem_limit = _vmem_limit_bytes()
    Bt = block_b if block_b is not None else _choose_block_b(
        B, Nvp, Nqp, Dvp, Dqp, Kp, Hp, h_out, Nsp, Nlp, return_att, vmem_limit)
    B_pad = _round_up(B, Bt)

    bf16 = jnp.bfloat16
    v_p = jnp.pad(v.astype(bf16), ((0, B_pad - B), (0, Nvp - Nv), (0, Dvp - Dv)))
    q_p = jnp.pad(q.astype(bf16), ((0, B_pad - B), (0, Nqp - Nq), (0, Dqp - Dq)))
    inputs = (v_p, q_p) + ptensors

    in_specs = [
        pl.BlockSpec((Bt, Nvp, Dvp), lambda b: (b, 0, 0)),
        pl.BlockSpec((Bt, Nqp, Dqp), lambda b: (b, 0, 0)),
    ] + [pl.BlockSpec(t.shape, lambda b: (0, 0)) for t in ptensors]

    out_specs = [pl.BlockSpec((Bt, 1, Hp), lambda b: (b, 0, 0))]
    out_shape = [jax.ShapeDtypeStruct((B_pad, 1, Hp), jnp.float32)]
    if return_att:
        # att presented flat as (B, h_out*Nsp, Nlp), bf16: lane-dense unmasked
        # stores and half the HBM writeback of f32.
        out_specs = [pl.BlockSpec((Bt, h_out * Nsp, Nlp),
                                  lambda b: (b, 0, 0))] + out_specs
        out_shape = [jax.ShapeDtypeStruct((B_pad, h_out * Nsp, Nlp), bf16)] \
            + out_shape

    in_bytes = sum(int(x.size) * x.dtype.itemsize for x in inputs)
    out_bytes = B_pad * Hp * 4 + (B_pad * h_out * Nsp * Nlp * 2 if return_att else 0)
    fc_flops = 2 * B_pad * (Nvp * Dvp + Nqp * Dqp) * 2 * Kp
    att_flops = 2 * B_pad * (h_out if return_att else 0) * Nsp * Kp * Nlp
    pool_flops = 2 * B_pad * (Nsp * Kp * Nlp + Nsp * Nlp * Kp + Kp * Hp)
    cost = pl.CostEstimate(flops=int(fc_flops + att_flops + pool_flops),
                           transcendentals=0,
                           bytes_accessed=int(in_bytes + out_bytes))

    kernel = functools.partial(_ban_kernel, with_att=return_att,
                               bcast_on_q=bcast_on_q)
    outs = pl.pallas_call(
        kernel,
        grid=(B_pad // Bt,),
        in_specs=in_specs,
        out_specs=out_specs,
        out_shape=out_shape,
        compiler_params=pltpu.CompilerParams(
            dimension_semantics=("parallel",),
            vmem_limit_bytes=vmem_limit),
        cost_estimate=cost,
    )(*inputs)

    if return_att:
        att_flat, logits3 = outs
        att = att_flat.reshape(B_pad, h_out, Nsp, Nlp)
        if bcast_on_q:
            att_maps = jnp.transpose(att[:B, :, :Nq, :Nv], (0, 1, 3, 2))
        else:
            att_maps = att[:B, :, :Nv, :Nq]
    else:
        (logits3,) = outs
        att_maps = None
    logits = logits3[:B, 0, :h_dim]
    return logits, att_maps


# --------------------------- parameter set-up ------------------------------- #
def positional_encoding(n, dim):
    position = jnp.arange(n, dtype=jnp.float32)[:, None]
    div_term = jnp.exp(jnp.arange(0, dim, 2, dtype=jnp.float32)
                       * (-math.log(10000.0) / dim))
    pe = jnp.zeros((n, dim), jnp.float32)
    pe = pe.at[:, 0::2].set(jnp.sin(position * div_term))
    pe = pe.at[:, 1::2].set(jnp.cos(position * div_term))
    return pe


def init_params(key, v_dim, q_dim, h_dim, h_out, k, max_nv, max_nq):
    K = h_dim * k
    keys = jax.random.split(key, 10)

    def wn_linear(kw, kb, in_dim, out_dim):
        # weight_norm(Linear, dim=None): W = g * V / ||V||_F,  g init = ||V||_F
        wV = jax.random.normal(kw, (out_dim, in_dim), jnp.float32) * 0.1
        g = jnp.sqrt(jnp.sum(wV * wV))
        w_eff = (g / jnp.sqrt(jnp.sum(wV * wV))) * wV
        b = jax.random.normal(kb, (out_dim,), jnp.float32) * 0.1
        return w_eff.T, b[None, :]                 # (in, out), (1, out)

    wv, bv = wn_linear(keys[0], keys[1], v_dim, K)
    wq, bq = wn_linear(keys[2], keys[3], q_dim, K)
    wvv, bvv = wn_linear(keys[4], keys[5], v_dim, K)
    wvq, bvq = wn_linear(keys[6], keys[7], q_dim, K)

    h_mat = jax.random.normal(keys[8], (h_out, K), jnp.float32)     # (1,h_out,1,K) squeezed
    h_bias = jax.random.normal(keys[9], (1, h_out), jnp.float32)    # (1,h_out,1,1) squeezed

    pe_v = positional_encoding(max_nv, v_dim)
    pe_q = positional_encoding(max_nq, q_dim)

    # BatchNorm1d(h_dim), inference: gamma=1, beta=0, running mean=0, var=1
    eps = 1e-5
    gamma = jnp.ones((h_dim,), jnp.float32)
    beta = jnp.zeros((h_dim,), jnp.float32)
    r_mean = jnp.zeros((h_dim,), jnp.float32)
    r_var = jnp.ones((h_dim,), jnp.float32)
    bn_scale = (gamma / jnp.sqrt(r_var + eps))[None, :]
    bn_shift = (beta - r_mean * bn_scale[0])[None, :]

    return dict(wv=wv, bv=bv, wq=wq, bq=bq, wvv=wvv, bvv=bvv, wvq=wvq, bvq=bvq,
                h_mat=h_mat, h_bias=h_bias, pe_v=pe_v, pe_q=pe_q,
                bn_scale=bn_scale, bn_shift=bn_shift)


# ------------------------ pure-JAX reference check -------------------------- #
def ref_forward(v, q, p, h_out, h_dim, k):
    hp = jax.lax.Precision.HIGHEST
    relu = lambda x: jnp.maximum(x, 0.0)
    v_pe = v + p["pe_v"][None, :v.shape[1]]
    q_pe = q + p["pe_q"][None, :q.shape[1]]
    v_ = relu(jnp.einsum("bnd,dk->bnk", v_pe, p["wv"], precision=hp) + p["bv"])
    q_ = relu(jnp.einsum("bnd,dk->bnk", q_pe, p["wq"], precision=hp) + p["bq"])
    vv_ = relu(jnp.einsum("bnd,dk->bnk", v, p["wvv"], precision=hp) + p["bvv"])
    vq_ = relu(jnp.einsum("bnd,dk->bnk", q, p["wvq"], precision=hp) + p["bvq"])
    att = (jnp.einsum("hk,bvk,bqk->bhvq", p["h_mat"], v_, q_, precision=hp)
           + p["h_bias"].reshape(1, h_out, 1, 1))
    a_sum = att.sum(axis=1)
    raw = jnp.einsum("bvk,bvq,bqk->bk", vv_, a_sum, vq_, precision=hp)
    pooled = raw.reshape(v.shape[0], h_dim, k).sum(-1)
    logits = pooled * p["bn_scale"] + p["bn_shift"]
    return logits, att


# ---------------------------------- main ------------------------------------ #
if __name__ == "__main__":
    v_dim, q_dim, h_dim, h_out, k = 32, 40, 16, 4, 3    # h_out <= c=32 branch
    max_n = 16

    key = jax.random.PRNGKey(0)
    kp, kv1, kq1, kv2, kq2 = jax.random.split(key, 5)
    params = init_params(kp, v_dim, q_dim, h_dim, h_out, k, max_n, max_n)

    def check(B, Nv, Nq, kv, kq):
        v = jax.random.normal(kv, (B, Nv, v_dim), jnp.float32)
        q = jax.random.normal(kq, (B, Nq, q_dim), jnp.float32)
        logits, att_maps = ban_layer_forward(v, q, params, h_dim, h_out, k)
        logits_na, _ = ban_layer_forward(v, q, params, h_dim, h_out, k,
                                         return_att=False)
        jax.block_until_ready((logits, att_maps, logits_na))

        ref_logits, ref_att = ref_forward(v, q, params, h_out, h_dim, k)
        tol_att = 2.5e-2 * (jnp.max(jnp.abs(ref_att)) + 1.0)
        tol_log = 2.5e-2 * (jnp.max(jnp.abs(ref_logits)) + 1.0)
        att_err = jnp.max(jnp.abs(att_maps.astype(jnp.float32) - ref_att))
        log_err = jnp.max(jnp.abs(logits - ref_logits))
        log_err_na = jnp.max(jnp.abs(logits_na - ref_logits))
        # Default (single-pass bf16) MXU precision + bf16 I/O vs f32 reference.
        assert att_err < tol_att, (att_err, tol_att)
        assert log_err < tol_log, (log_err, tol_log)
        assert log_err_na < tol_log, (log_err_na, tol_log)

    # Nq < Nv: h_mat broadcast on the q side (swap path, wrapper transpose).
    check(4, 16, 8, kv1, kq1)
    # Nv < Nq: default path; B=3 also exercises batch-tile padding (Bt=2).
    check(3, 8, 16, kv2, kq2)

    print("KERNEL_OK")
</pallas_src>

<mosaic_0001>
module attributes {stable_mosaic.version = 11 : i64} {
  func.func @_ban_kernel(%arg0: i32, %arg1: memref<2x128x128xbf16, #tpu.memory_space<vmem>>, %arg2: memref<2x8x128xbf16, #tpu.memory_space<vmem>>, %arg3: memref<128x256xbf16, #tpu.memory_space<vmem>>, %arg4: memref<128x256xbf16, #tpu.memory_space<vmem>>, %arg5: memref<128x256xbf16, #tpu.memory_space<vmem>>, %arg6: memref<8x256xbf16, #tpu.memory_space<vmem>>, %arg7: memref<4x128xbf16, #tpu.memory_space<vmem>>, %arg8: memref<128x128xbf16, #tpu.memory_space<vmem>>, %arg9: memref<1x256xf32, #tpu.memory_space<vmem>>, %arg10: memref<2x32x128xbf16, #tpu.memory_space<vmem>>, %arg11: memref<2x1x128xf32, #tpu.memory_space<vmem>>) attributes {dimension_semantics = [#tpu.dimension_semantics<parallel>], iteration_bounds = array<i64: 2>, scalar_prefetch = 0 : i64, scratch_operands = 0 : i64, tpu.core_type = #tpu.core_type<tc>, window_params = [{transform_indices = @transform_0, window_bounds = array<i64: 2, 128, 128>}, {transform_indices = @transform_1, window_bounds = array<i64: 2, 8, 128>}, {pipeline_mode = #tpu.pipeline_mode<synchronous>, transform_indices = @transform_2, window_bounds = array<i64: 128, 256>}, {pipeline_mode = #tpu.pipeline_mode<synchronous>, transform_indices = @transform_3, window_bounds = array<i64: 128, 256>}, {pipeline_mode = #tpu.pipeline_mode<synchronous>, transform_indices = @transform_4, window_bounds = array<i64: 128, 256>}, {pipeline_mode = #tpu.pipeline_mode<synchronous>, transform_indices = @transform_5, window_bounds = array<i64: 8, 256>}, {pipeline_mode = #tpu.pipeline_mode<synchronous>, transform_indices = @transform_6, window_bounds = array<i64: 4, 128>}, {pipeline_mode = #tpu.pipeline_mode<synchronous>, transform_indices = @transform_7, window_bounds = array<i64: 128, 128>}, {pipeline_mode = #tpu.pipeline_mode<synchronous>, transform_indices = @transform_8, window_bounds = array<i64: 1, 256>}, {transform_indices = @transform_9, window_bounds = array<i64: 2, 32, 128>}, {transform_indices = @transform_10, window_bounds = array<i64: 2, 1, 128>}]} {
    %c0 = arith.constant 0 : index
    %c0_0 = arith.constant 0 : index
    %c0_1 = arith.constant 0 : index
    %0 = vector.load %arg1[%c0, %c0_0, %c0_1] : memref<2x128x128xbf16, #tpu.memory_space<vmem>>, vector<2x128x128xbf16>
    %1 = vector.shape_cast %0 : vector<2x128x128xbf16> to vector<256x128xbf16>
    %c0_2 = arith.constant 0 : index
    %c0_3 = arith.constant 0 : index
    %2 = vector.load %arg3[%c0_2, %c0_3] : memref<128x256xbf16, #tpu.memory_space<vmem>>, vector<128x256xbf16>
    %cst = arith.constant dense<0.000000e+00> : vector<256x256xf32>
    %3 = tpu.matmul %1, %2, %cst {dimension_numbers = #tpu.dot_dimension_numbers<[1], [0], [0], [1], [0, 0, 1, 1], [], []>} : vector<256x128xbf16>, vector<128x256xbf16>, vector<256x256xf32> -> vector<256x256xf32>
    %4 = vector.shape_cast %3 : vector<256x256xf32> to vector<2x128x256xf32>
    %c0_4 = arith.constant 0 : index
    %c0_5 = arith.constant 0 : index
    %5 = vector.load %arg4[%c0_4, %c0_5] : memref<128x256xbf16, #tpu.memory_space<vmem>>, vector<128x256xbf16>
    %6 = vector.shape_cast %5 : vector<128x256xbf16> to vector<1x128x256xbf16>
    %7 = arith.extf %6 : vector<1x128x256xbf16> to vector<1x128x256xf32>
    %8 = vector.broadcast %7 : vector<1x128x256xf32> to vector<2x128x256xf32>
    %9 = arith.addf %4, %8 : vector<2x128x256xf32>
    %cst_6 = arith.constant 0.000000e+00 : f32
    %10 = vector.broadcast %cst_6 : f32 to vector<2x128x256xf32>
    %11 = arith.maximumf %9, %10 : vector<2x128x256xf32>
    %c0_7 = arith.constant 0 : index
    %c0_8 = arith.constant 0 : index
    %c0_9 = arith.constant 0 : index
    %12 = vector.load %arg2[%c0_7, %c0_8, %c0_9] : memref<2x8x128xbf16, #tpu.memory_space<vmem>>, vector<2x8x128xbf16>
    %13 = vector.shape_cast %12 : vector<2x8x128xbf16> to vector<16x128xbf16>
    %c0_10 = arith.constant 0 : index
    %c0_11 = arith.constant 0 : index
    %14 = vector.load %arg5[%c0_10, %c0_11] : memref<128x256xbf16, #tpu.memory_space<vmem>>, vector<128x256xbf16>
    %cst_12 = arith.constant dense<0.000000e+00> : vector<16x256xf32>
    %15 = tpu.matmul %13, %14, %cst_12 {dimension_numbers = #tpu.dot_dimension_numbers<[1], [0], [0], [1], [0, 0, 1, 1], [], []>} : vector<16x128xbf16>, vector<128x256xbf16>, vector<16x256xf32> -> vector<16x256xf32>
    %16 = vector.shape_cast %15 : vector<16x256xf32> to vector<2x8x256xf32>
    %c0_13 = arith.constant 0 : index
    %c0_14 = arith.constant 0 : index
    %17 = vector.load %arg6[%c0_13, %c0_14] : memref<8x256xbf16, #tpu.memory_space<vmem>>, vector<8x256xbf16>
    %18 = vector.shape_cast %17 : vector<8x256xbf16> to vector<1x8x256xbf16>
    %19 = arith.extf %18 : vector<1x8x256xbf16> to vector<1x8x256xf32>
    %20 = vector.broadcast %19 : vector<1x8x256xf32> to vector<2x8x256xf32>
    %21 = arith.addf %16, %20 : vector<2x8x256xf32>
    %cst_15 = arith.constant 0.000000e+00 : f32
    %22 = vector.broadcast %cst_15 : f32 to vector<2x8x256xf32>
    %23 = arith.maximumf %21, %22 : vector<2x8x256xf32>
    %c0_16 = arith.constant 0 : index
    %c0_17 = arith.constant 0 : index
    %24 = vector.load %arg7[%c0_16, %c0_17] : memref<4x128xbf16, #tpu.memory_space<vmem>>, vector<4x128xbf16>
    %25 = arith.extf %24 : vector<4x128xbf16> to vector<4x128xf32>
    %c0_18 = arith.constant 0 : index
    %c0_19 = arith.constant 0 : index
    %26 = vector.load %arg8[%c0_18, %c0_19] : memref<128x128xbf16, #tpu.memory_space<vmem>>, vector<128x128xbf16>
    %27 = arith.extf %26 : vector<128x128xbf16> to vector<128x128xf32>
    %c0_20 = arith.constant 0 : index
    %c0_21 = arith.constant 0 : index
    %28 = vector.load %arg9[%c0_20, %c0_21] : memref<1x256xf32, #tpu.memory_space<vmem>>, vector<1x128xf32>
    %c0_22 = arith.constant 0 : index
    %c128 = arith.constant 128 : index
    %29 = vector.load %arg9[%c0_22, %c128] : memref<1x256xf32, #tpu.memory_space<vmem>>, vector<1x128xf32>
    %30 = vector.extract_strided_slice %11 {offsets = [0, 0, 0], sizes = [1, 128, 128], strides = [1, 1, 1]} : vector<2x128x256xf32> to vector<1x128x128xf32>
    %31 = vector.shape_cast %30 : vector<1x128x128xf32> to vector<128x128xf32>
    %32 = vector.extract_strided_slice %11 {offsets = [0, 0, 128], sizes = [1, 128, 128], strides = [1, 1, 1]} : vector<2x128x256xf32> to vector<1x128x128xf32>
    %33 = vector.shape_cast %32 : vector<1x128x128xf32> to vector<128x128xf32>
    %34 = vector.extract_strided_slice %23 {offsets = [0, 0, 0], sizes = [1, 8, 128], strides = [1, 1, 1]} : vector<2x8x256xf32> to vector<1x8x128xf32>
    %35 = vector.shape_cast %34 : vector<1x8x128xf32> to vector<8x128xf32>
    %36 = vector.extract_strided_slice %23 {offsets = [0, 0, 128], sizes = [1, 8, 128], strides = [1, 1, 1]} : vector<2x8x256xf32> to vector<1x8x128xf32>
    %37 = vector.shape_cast %36 : vector<1x8x128xf32> to vector<8x128xf32>
    %38 = vector.shape_cast %25 : vector<4x128xf32> to vector<4x1x128xf32>
    %39 = vector.shape_cast %35 : vector<8x128xf32> to vector<1x8x128xf32>
    %40 = vector.broadcast %38 : vector<4x1x128xf32> to vector<4x8x128xf32>
    %41 = vector.broadcast %39 : vector<1x8x128xf32> to vector<4x8x128xf32>
    %42 = arith.mulf %40, %41 : vector<4x8x128xf32>
    %43 = arith.truncf %42 : vector<4x8x128xf32> to vector<4x8x128xbf16>
    %44 = vector.shape_cast %43 : vector<4x8x128xbf16> to vector<32x128xbf16>
    %45 = arith.truncf %31 : vector<128x128xf32> to vector<128x128xbf16>
    %cst_23 = arith.constant dense<0.000000e+00> : vector<32x128xf32>
    %46 = tpu.matmul %44, %45, %cst_23 {dimension_numbers = #tpu.dot_dimension_numbers<[1], [1], [0], [0], [0, 0, 1, 0], [], []>} : vector<32x128xbf16>, vector<128x128xbf16>, vector<32x128xf32> -> vector<32x128xf32>
    %47 = arith.truncf %46 : vector<32x128xf32> to vector<32x128xbf16>
    %c0_24 = arith.constant 0 : index
    %c0_25 = arith.constant 0 : index
    %c0_26 = arith.constant 0 : index
    %48 = vector.load %arg10[%c0_24, %c0_25, %c0_26] : memref<2x32x128xbf16, #tpu.memory_space<vmem>>, vector<1x32x128xbf16>
    %49 = vector.shape_cast %48 : vector<1x32x128xbf16> to vector<32x128xbf16>
    %50 = vector.shape_cast %47 : vector<32x128xbf16> to vector<1x32x128xbf16>
    tpu.vector_store %arg10[%c0_24, %c0_25, %c0_26], %50 {strides = array<i32>} : memref<2x32x128xbf16, #tpu.memory_space<vmem>>, vector<1x32x128xbf16>,
    %51 = vector.broadcast %28 : vector<1x128xf32> to vector<8x128xf32>
    %52 = arith.mulf %35, %51 : vector<8x128xf32>
    %cst_27 = arith.constant dense<0.000000e+00> : vector<8x128xf32>
    %53 = tpu.matmul %52, %31, %cst_27 {dimension_numbers = #tpu.dot_dimension_numbers<[1], [1], [0], [0], [0, 0, 1, 0], [], []>} : vector<8x128xf32>, vector<128x128xf32>, vector<8x128xf32> -> vector<8x128xf32>
    %cst_28 = arith.constant dense<0.000000e+00> : vector<8x128xf32>
    %54 = tpu.matmul %53, %33, %cst_28 {dimension_numbers = #tpu.dot_dimension_numbers<[1], [0], [0], [1], [0, 0, 1, 1], [], []>} : vector<8x128xf32>, vector<128x128xf32>, vector<8x128xf32> -> vector<8x128xf32>
    %55 = arith.mulf %37, %54 : vector<8x128xf32>
    %cst_29 = arith.constant dense<0.000000e+00> : vector<128xf32>
    %56 = vector.multi_reduction <add>, %55, %cst_29 [0] : vector<8x128xf32> to vector<128xf32>
    %57 = vector.shape_cast %56 : vector<128xf32> to vector<1x128xf32>
    %cst_30 = arith.constant dense<0.000000e+00> : vector<1x128xf32>
    %58 = tpu.matmul %57, %27, %cst_30 {dimension_numbers = #tpu.dot_dimension_numbers<[1], [0], [0], [1], [0, 0, 1, 1], [], []>} : vector<1x128xf32>, vector<128x128xf32>, vector<1x128xf32> -> vector<1x128xf32>
    %59 = arith.addf %58, %29 : vector<1x128xf32>
    %c0_31 = arith.constant 0 : index
    %c0_32 = arith.constant 0 : index
    %c0_33 = arith.constant 0 : index
    %60 = vector.load %arg11[%c0_31, %c0_32, %c0_33] : memref<2x1x128xf32, #tpu.memory_space<vmem>>, vector<1x1x128xf32>
    %61 = vector.shape_cast %60 : vector<1x1x128xf32> to vector<1x128xf32>
    %62 = vector.shape_cast %59 : vector<1x128xf32> to vector<1x1x128xf32>
    tpu.vector_store %arg11[%c0_31, %c0_32, %c0_33], %62 {strides = array<i32>} : memref<2x1x128xf32, #tpu.memory_space<vmem>>, vector<1x1x128xf32>,
    %63 = vector.extract_strided_slice %11 {offsets = [1, 0, 0], sizes = [1, 128, 128], strides = [1, 1, 1]} : vector<2x128x256xf32> to vector<1x128x128xf32>
    %64 = vector.shape_cast %63 : vector<1x128x128xf32> to vector<128x128xf32>
    %65 = vector.extract_strided_slice %11 {offsets = [1, 0, 128], sizes = [1, 128, 128], strides = [1, 1, 1]} : vector<2x128x256xf32> to vector<1x128x128xf32>
    %66 = vector.shape_cast %65 : vector<1x128x128xf32> to vector<128x128xf32>
    %67 = vector.extract_strided_slice %23 {offsets = [1, 0, 0], sizes = [1, 8, 128], strides = [1, 1, 1]} : vector<2x8x256xf32> to vector<1x8x128xf32>
    %68 = vector.shape_cast %67 : vector<1x8x128xf32> to vector<8x128xf32>
    %69 = vector.extract_strided_slice %23 {offsets = [1, 0, 128], sizes = [1, 8, 128], strides = [1, 1, 1]} : vector<2x8x256xf32> to vector<1x8x128xf32>
    %70 = vector.shape_cast %69 : vector<1x8x128xf32> to vector<8x128xf32>
    %71 = vector.shape_cast %25 : vector<4x128xf32> to vector<4x1x128xf32>
    %72 = vector.shape_cast %68 : vector<8x128xf32> to vector<1x8x128xf32>
    %73 = vector.broadcast %71 : vector<4x1x128xf32> to vector<4x8x128xf32>
    %74 = vector.broadcast %72 : vector<1x8x128xf32> to vector<4x8x128xf32>
    %75 = arith.mulf %73, %74 : vector<4x8x128xf32>
    %76 = arith.truncf %75 : vector<4x8x128xf32> to vector<4x8x128xbf16>
    %77 = vector.shape_cast %76 : vector<4x8x128xbf16> to vector<32x128xbf16>
    %78 = arith.truncf %64 : vector<128x128xf32> to vector<128x128xbf16>
    %cst_34 = arith.constant dense<0.000000e+00> : vector<32x128xf32>
    %79 = tpu.matmul %77, %78, %cst_34 {dimension_numbers = #tpu.dot_dimension_numbers<[1], [1], [0], [0], [0, 0, 1, 0], [], []>} : vector<32x128xbf16>, vector<128x128xbf16>, vector<32x128xf32> -> vector<32x128xf32>
    %80 = arith.truncf %79 : vector<32x128xf32> to vector<32x128xbf16>
    %c1 = arith.constant 1 : index
    %c0_35 = arith.constant 0 : index
    %c0_36 = arith.constant 0 : index
    %81 = vector.load %arg10[%c1, %c0_35, %c0_36] : memref<2x32x128xbf16, #tpu.memory_space<vmem>>, vector<1x32x128xbf16>
    %82 = vector.shape_cast %81 : vector<1x32x128xbf16> to vector<32x128xbf16>
    %83 = vector.shape_cast %80 : vector<32x128xbf16> to vector<1x32x128xbf16>
    tpu.vector_store %arg10[%c1, %c0_35, %c0_36], %83 {strides = array<i32>} : memref<2x32x128xbf16, #tpu.memory_space<vmem>>, vector<1x32x128xbf16>,
    %84 = vector.broadcast %28 : vector<1x128xf32> to vector<8x128xf32>
    %85 = arith.mulf %68, %84 : vector<8x128xf32>
    %cst_37 = arith.constant dense<0.000000e+00> : vector<8x128xf32>
    %86 = tpu.matmul %85, %64, %cst_37 {dimension_numbers = #tpu.dot_dimension_numbers<[1], [1], [0], [0], [0, 0, 1, 0], [], []>} : vector<8x128xf32>, vector<128x128xf32>, vector<8x128xf32> -> vector<8x128xf32>
    %cst_38 = arith.constant dense<0.000000e+00> : vector<8x128xf32>
    %87 = tpu.matmul %86, %66, %cst_38 {dimension_numbers = #tpu.dot_dimension_numbers<[1], [0], [0], [1], [0, 0, 1, 1], [], []>} : vector<8x128xf32>, vector<128x128xf32>, vector<8x128xf32> -> vector<8x128xf32>
    %88 = arith.mulf %70, %87 : vector<8x128xf32>
    %cst_39 = arith.constant dense<0.000000e+00> : vector<128xf32>
    %89 = vector.multi_reduction <add>, %88, %cst_39 [0] : vector<8x128xf32> to vector<128xf32>
    %90 = vector.shape_cast %89 : vector<128xf32> to vector<1x128xf32>
    %cst_40 = arith.constant dense<0.000000e+00> : vector<1x128xf32>
    %91 = tpu.matmul %90, %27, %cst_40 {dimension_numbers = #tpu.dot_dimension_numbers<[1], [0], [0], [1], [0, 0, 1, 1], [], []>} : vector<1x128xf32>, vector<128x128xf32>, vector<1x128xf32> -> vector<1x128xf32>
    %92 = arith.addf %91, %29 : vector<1x128xf32>
    %c1_41 = arith.constant 1 : index
    %c0_42 = arith.constant 0 : index
    %c0_43 = arith.constant 0 : index
    %93 = vector.load %arg11[%c1_41, %c0_42, %c0_43] : memref<2x1x128xf32, #tpu.memory_space<vmem>>, vector<1x1x128xf32>
    %94 = vector.shape_cast %93 : vector<1x1x128xf32> to vector<1x128xf32>
    %95 = vector.shape_cast %92 : vector<1x128xf32> to vector<1x1x128xf32>
    tpu.vector_store %arg11[%c1_41, %c0_42, %c0_43], %95 {strides = array<i32>} : memref<2x1x128xf32, #tpu.memory_space<vmem>>, vector<1x1x128xf32>,
    return
  }
  func.func @transform_0(%arg0: i32) -> (i32, i32, i32) {
    %c0_i32 = arith.constant 0 : i32
    %c0_i32_0 = arith.constant 0 : i32
    %c0_i32_1 = arith.constant 0 : i32
    return %arg0, %c0_i32, %c0_i32_0 : i32, i32, i32
  }
  func.func @transform_1(%arg0: i32) -> (i32, i32, i32) {
    %c0_i32 = arith.constant 0 : i32
    %c0_i32_0 = arith.constant 0 : i32
    %c0_i32_1 = arith.constant 0 : i32
    return %arg0, %c0_i32, %c0_i32_0 : i32, i32, i32
  }
  func.func @transform_2(%arg0: i32) -> (i32, i32) {
    %c0_i32 = arith.constant 0 : i32
    %c0_i32_0 = arith.constant 0 : i32
    %c0_i32_1 = arith.constant 0 : i32
    return %c0_i32, %c0_i32_0 : i32, i32
  }
  func.func @transform_3(%arg0: i32) -> (i32, i32) {
    %c0_i32 = arith.constant 0 : i32
    %c0_i32_0 = arith.constant 0 : i32
    %c0_i32_1 = arith.constant 0 : i32
    return %c0_i32, %c0_i32_0 : i32, i32
  }
  func.func @transform_4(%arg0: i32) -> (i32, i32) {
    %c0_i32 = arith.constant 0 : i32
    %c0_i32_0 = arith.constant 0 : i32
    %c0_i32_1 = arith.constant 0 : i32
    return %c0_i32, %c0_i32_0 : i32, i32
  }
  func.func @transform_5(%arg0: i32) -> (i32, i32) {
    %c0_i32 = arith.constant 0 : i32
    %c0_i32_0 = arith.constant 0 : i32
    %c0_i32_1 = arith.constant 0 : i32
    return %c0_i32, %c0_i32_0 : i32, i32
  }
  func.func @transform_6(%arg0: i32) -> (i32, i32) {
    %c0_i32 = arith.constant 0 : i32
    %c0_i32_0 = arith.constant 0 : i32
    %c0_i32_1 = arith.constant 0 : i32
    return %c0_i32, %c0_i32_0 : i32, i32
  }
  func.func @transform_7(%arg0: i32) -> (i32, i32) {
    %c0_i32 = arith.constant 0 : i32
    %c0_i32_0 = arith.constant 0 : i32
    %c0_i32_1 = arith.constant 0 : i32
    return %c0_i32, %c0_i32_0 : i32, i32
  }
  func.func @transform_8(%arg0: i32) -> (i32, i32) {
    %c0_i32 = arith.constant 0 : i32
    %c0_i32_0 = arith.constant 0 : i32
    %c0_i32_1 = arith.constant 0 : i32
    return %c0_i32, %c0_i32_0 : i32, i32
  }
  func.func @transform_9(%arg0: i32) -> (i32, i32, i32) {
    %c0_i32 = arith.constant 0 : i32
    %c0_i32_0 = arith.constant 0 : i32
    %c0_i32_1 = arith.constant 0 : i32
    return %arg0, %c0_i32, %c0_i32_0 : i32, i32, i32
  }
  func.func @transform_10(%arg0: i32) -> (i32, i32, i32) {
    %c0_i32 = arith.constant 0 : i32
    %c0_i32_0 = arith.constant 0 : i32
    %c0_i32_1 = arith.constant 0 : i32
    return %arg0, %c0_i32, %c0_i32_0 : i32, i32, i32
  }
}

</mosaic_0001>

<llo_original>
// kernel: tpu_custom_call.1
$region0: #{tpu_custom_call.1}
  #allocation0 [shape = 'u32[]', space=smem, size = 0x4, offset = 0x4, fixed_abs, tag = 'smem constant byte address 0x4 - core index']
  #allocation1 [shape = 'u32[72,128]{1,0:T(1,128)}', space=vmem, size = 0x9000, scoped, tag = 'internal scratch']
  %s0 = inlined_call_operand.hbm [shape: bf16[4,128,128], index: 0, kind: input, shape index: {}]
  %s1 = inlined_call_operand.hbm [shape: bf16[4,8,128], index: 1, kind: input, shape index: {}]
  %s2 = inlined_call_operand.hbm [shape: bf16[128,256], index: 2, kind: input, shape index: {}]
  %s3 = inlined_call_operand.hbm [shape: bf16[128,256], index: 3, kind: input, shape index: {}]
  %s4 = inlined_call_operand.hbm [shape: bf16[128,256], index: 4, kind: input, shape index: {}]
  %s5 = inlined_call_operand.hbm [shape: bf16[8,256], index: 5, kind: input, shape index: {}]
  %s6 = inlined_call_operand.vmem [shape: bf16[4,128], index: 6, kind: input, shape index: {}]
  %s7 = inlined_call_operand.hbm [shape: bf16[128,128], index: 7, kind: input, shape index: {}]
  %s8 = inlined_call_operand.vmem [shape: f32[1,256], index: 8, kind: input, shape index: {}]
  %s9 = inlined_call_operand.hbm [shape: bf16[4,32,128], index: 9, kind: output, shape index: {0}]
  %s10 = inlined_call_operand.hbm [shape: f32[4,1,128], index: 10, kind: output, shape index: {1}]
  %11 = xla_tuple %s9, %s10
  %s12 = sld [smem:[#allocation0]]
  $region105: #{tpu_custom_call.1} parent=0
    _
  %s14 = ssub.s32 1, %s12
  %s15 = scalar_select 0, %s14, %s12
  $region1: #{tpu_custom_call.1} parent=0
    #allocation2 [shape = 'u8[131072]{0}', space=vmem, size = 0x20000, scoped, tag = 'input window, operand 0']
    #allocation3 [shape = 's32[2]{0}', space=sflag, size = 0x8, scoped, tag = 'scoped memory for tpu_custom_call.1']
    #allocation4 [shape = 's32[2]{0}', space=sflag, size = 0x8, scoped, tag = 'scoped memory for tpu_custom_call.1']
    #allocation5 [shape = 'u8[8192]{0}', space=vmem, size = 0x2000, scoped, tag = 'input window, operand 1']
    #allocation6 [shape = 's32[2]{0}', space=sflag, size = 0x8, scoped, tag = 'scoped memory for tpu_custom_call.1']
    #allocation7 [shape = 'u8[65536]{0}', space=vmem, size = 0x10000, scoped, tag = 'input window, operand 2, single buffered']
    #allocation8 [shape = 'u8[65536]{0}', space=vmem, size = 0x10000, scoped, tag = 'input window, operand 3, single buffered']
    #allocation9 [shape = 's32[1]{0}', space=sflag, size = 0x4, scoped, tag = 'scoped memory for tpu_custom_call.1']
    #allocation10 [shape = 'u8[65536]{0}', space=vmem, size = 0x10000, scoped, tag = 'input window, operand 4, single buffered']
    #allocation11 [shape = 'u8[4096]{0}', space=vmem, size = 0x1000, scoped, tag = 'input window, operand 5, single buffered']
    #allocation12 [shape = 's32[1]{0}', space=sflag, size = 0x4, scoped, tag = 'scoped memory for tpu_custom_call.1']
    #allocation13 [shape = 'u8[32768]{0}', space=vmem, size = 0x8000, scoped, tag = 'input window, operand 7, single buffered']
    #allocation14 [shape = 'u8[32768]{0}', space=vmem, size = 0x8000, scoped, tag = 'output window, operand 0']
    #allocation15 [shape = 'u8[2048]{0}', space=vmem, size = 0x800, scoped, tag = 'output window, operand 1']
    #allocation16 [shape = 's32[2]{0}', space=sflag, size = 0x8, scoped, tag = 'scoped memory for tpu_custom_call.1']
    %16 = vsyncpa [#allocation3], 0
    %s17 = scalar_lea.sflag [#allocation3], 1
    %18 = vsyncpa %s17, 0
    %19 = vsyncpa [#allocation6], 0
    %s20 = scalar_lea.sflag [#allocation6], 1
    %21 = vsyncpa %s20, 0
    %22 = vsyncpa [#allocation9], 0
    %23 = vsyncpa [#allocation12], 0
    %24 = vsyncpa [#allocation4], 0
    %s25 = scalar_lea.sflag [#allocation4], 1
    %26 = vsyncpa %s25, 0
    %27 = vsyncpa [#allocation16], 0
    %s28 = scalar_lea.sflag [#allocation16], 1
    %29 = vsyncpa %s28, 0
    loop: start=0, step=1, limit=4
    $region2: #{tpu_custom_call.1} parent=1 // loop_pre_header
      _
    $region3: #{tpu_custom_call.1} parent=1 // loop_header
      %s31 = sphi 0, %s35
      %p32 = scmp.ge.s32.totalorder %s31, 4
      %s41 = sphi 0, %s43
      %s44 = sphi 0, %s41
      %s45 = sphi 0, %s44
      %s61 = sphi 0, %s45
      %s67 = sphi 0, %s69
      %s70 = sphi 0, %s67
      %s71 = sphi 0, %s70
      %s87 = sphi 0, %s71
      %s91 = sphi 0, %s91
      %s93 = sphi 0, %s91
      %s94 = sphi 0, %s93
      %s108 = sphi 0, %s94
      %s112 = sphi 0, %s112
      %s114 = sphi 0, %s112
      %s115 = sphi 0, %s114
      %s129 = sphi 0, %s115
      %s133 = sphi 0, %s133
      %s135 = sphi 0, %s133
      %s136 = sphi 0, %s135
      %s150 = sphi 0, %s136
      %s154 = sphi 0, %s154
      %s156 = sphi 0, %s154
      %s157 = sphi 0, %s156
      %s171 = sphi 0, %s157
      %s175 = sphi 0, %s175
      %s177 = sphi 0, %s175
      %s178 = sphi 0, %s177
      %s192 = sphi 0, %s178
      %s196 = sphi 0, %s196
      %s198 = sphi 0, %s196
      %s199 = sphi 0, %s198
      %s213 = sphi 0, %s199
      %s217 = sphi 0, %s217
      %s219 = sphi 0, %s217
      %s220 = sphi 0, %s219
      %s234 = sphi 0, %s220
      %s240 = sphi 0, %s242
      %s243 = sphi 0, %s240
      %s244 = sphi 0, %s243
      %s260 = sphi 0, %s244
      %s266 = sphi 0, %s268
      %s269 = sphi 0, %s266
      %s270 = sphi 0, %s269
      %s286 = sphi 0, %s270
    $region4: #{tpu_custom_call.1} parent=1 // loop_header_branch
      %34 = sbr.rel (%p32) target = $region8
    $region5: #{tpu_custom_call.1} parent=1 // loop_body
      %s36 = ssub.s32 %s31, 1
      %s37 = ssub.s32 %s31, 2
      %s38 = sadd.s32 %s31, 1
      %s39 = ssub.s32 %s31, %s38
      %p40 = scmp.eq.s32.totalorder %s39, 0
      %s42 = sadd.s32 %s41, 1
      %s43 = scalar_select %p40, %s41, %s42
      %p46 = pneg %p40
      %p47 = scmp.eq.s32.totalorder %s31, 1
      %p48 = por %p46, %p47
      %p49 = scmp.ne.s32.totalorder %s41, %s44
      %p50 = scmp.eq.s32.totalorder %s31, 0
      %p51 = por %p49, %p50
      %p52 = scmp.ne.s32.totalorder %s41, %s44
      %p53 = scmp.eq.s32.totalorder %s36, 1
      %p54 = por %p52, %p53
      %p55 = scmp.ne.s32.totalorder %s44, %s45
      %p56 = scmp.eq.s32.totalorder %s36, 0
      %p57 = por %p55, %p56
      %p58 = scmp.ne.s32.totalorder %s44, %s45
      %p59 = scmp.eq.s32.totalorder %s37, 1
      %p60 = por %p58, %p59
      %p62 = scmp.ne.s32.totalorder %s45, %s61
      %p63 = scmp.eq.s32.totalorder %s37, 0
      %p64 = por %p62, %p63
      %s65 = ssub.s32 %s31, %s38
      %p66 = scmp.eq.s32.totalorder %s65, 0
      %s68 = sadd.s32 %s67, 1
      %s69 = scalar_select %p66, %s67, %s68
      %p72 = pneg %p66
      %p73 = scmp.eq.s32.totalorder %s31, 1
      %p74 = por %p72, %p73
      %p75 = scmp.ne.s32.totalorder %s67, %s70
      %p76 = scmp.eq.s32.totalorder %s31, 0
      %p77 = por %p75, %p76
      %p78 = scmp.ne.s32.totalorder %s67, %s70
      %p79 = scmp.eq.s32.totalorder %s36, 1
      %p80 = por %p78, %p79
      %p81 = scmp.ne.s32.totalorder %s70, %s71
      %p82 = scmp.eq.s32.totalorder %s36, 0
      %p83 = por %p81, %p82
      %p84 = scmp.ne.s32.totalorder %s70, %s71
      %p85 = scmp.eq.s32.totalorder %s37, 1
      %p86 = por %p84, %p85
      %p88 = scmp.ne.s32.totalorder %s71, %s87
      %p89 = scmp.eq.s32.totalorder %s37, 0
      %p90 = por %p88, %p89
      %s92 = sadd.s32 %s91, 1
      %p95 = scmp.eq.s32.totalorder %s31, 1
      %p96 = scmp.ne.s32.totalorder %s91, %s93
      %p97 = scmp.eq.s32.totalorder %s31, 0
      %p98 = por %p96, %p97
      %p99 = scmp.ne.s32.totalorder %s91, %s93
      %p100 = scmp.eq.s32.totalorder %s36, 1
      %p101 = por %p99, %p100
      %p102 = scmp.ne.s32.totalorder %s93, %s94
      %p103 = scmp.eq.s32.totalorder %s36, 0
      %p104 = por %p102, %p103
      %p105 = scmp.ne.s32.totalorder %s93, %s94
      %p106 = scmp.eq.s32.totalorder %s37, 1
      %p107 = por %p105, %p106
      %p109 = scmp.ne.s32.totalorder %s94, %s108
      %p110 = scmp.eq.s32.totalorder %s37, 0
      %p111 = por %p109, %p110
      %s113 = sadd.s32 %s112, 1
      %p116 = scmp.eq.s32.totalorder %s31, 1
      %p117 = scmp.ne.s32.totalorder %s112, %s114
      %p118 = scmp.eq.s32.totalorder %s31, 0
      %p119 = por %p117, %p118
      %p120 = scmp.ne.s32.totalorder %s112, %s114
      %p121 = scmp.eq.s32.totalorder %s36, 1
      %p122 = por %p120, %p121
      %p123 = scmp.ne.s32.totalorder %s114, %s115
      %p124 = scmp.eq.s32.totalorder %s36, 0
      %p125 = por %p123, %p124
      %p126 = scmp.ne.s32.totalorder %s114, %s115
      %p127 = scmp.eq.s32.totalorder %s37, 1
      %p128 = por %p126, %p127
      %p130 = scmp.ne.s32.totalorder %s115, %s129
      %p131 = scmp.eq.s32.totalorder %s37, 0
      %p132 = por %p130, %p131
      %s134 = sadd.s32 %s133, 1
      %p137 = scmp.eq.s32.totalorder %s31, 1
      %p138 = scmp.ne.s32.totalorder %s133, %s135
      %p139 = scmp.eq.s32.totalorder %s31, 0
      %p140 = por %p138, %p139
      %p141 = scmp.ne.s32.totalorder %s133, %s135
      %p142 = scmp.eq.s32.totalorder %s36, 1
      %p143 = por %p141, %p142
      %p144 = scmp.ne.s32.totalorder %s135, %s136
      %p145 = scmp.eq.s32.totalorder %s36, 0
      %p146 = por %p144, %p145
      %p147 = scmp.ne.s32.totalorder %s135, %s136
      %p148 = scmp.eq.s32.totalorder %s37, 1
      %p149 = por %p147, %p148
      %p151 = scmp.ne.s32.totalorder %s136, %s150
      %p152 = scmp.eq.s32.totalorder %s37, 0
      %p153 = por %p151, %p152
      %s155 = sadd.s32 %s154, 1
      %p158 = scmp.eq.s32.totalorder %s31, 1
      %p159 = scmp.ne.s32.totalorder %s154, %s156
      %p160 = scmp.eq.s32.totalorder %s31, 0
      %p161 = por %p159, %p160
      %p162 = scmp.ne.s32.totalorder %s154, %s156
      %p163 = scmp.eq.s32.totalorder %s36, 1
      %p164 = por %p162, %p163
      %p165 = scmp.ne.s32.totalorder %s156, %s157
      %p166 = scmp.eq.s32.totalorder %s36, 0
      %p167 = por %p165, %p166
      %p168 = scmp.ne.s32.totalorder %s156, %s157
      %p169 = scmp.eq.s32.totalorder %s37, 1
      %p170 = por %p168, %p169
      %p172 = scmp.ne.s32.totalorder %s157, %s171
      %p173 = scmp.eq.s32.totalorder %s37, 0
      %p174 = por %p172, %p173
      %s176 = sadd.s32 %s175, 1
      %p179 = scmp.eq.s32.totalorder %s31, 1
      %p180 = scmp.ne.s32.totalorder %s175, %s177
      %p181 = scmp.eq.s32.totalorder %s31, 0
      %p182 = por %p180, %p181
      %p183 = scmp.ne.s32.totalorder %s175, %s177
      %p184 = scmp.eq.s32.totalorder %s36, 1
      %p185 = por %p183, %p184
      %p186 = scmp.ne.s32.totalorder %s177, %s178
      %p187 = scmp.eq.s32.totalorder %s36, 0
      %p188 = por %p186, %p187
      %p189 = scmp.ne.s32.totalorder %s177, %s178
      %p190 = scmp.eq.s32.totalorder %s37, 1
      %p191 = por %p189, %p190
      %p193 = scmp.ne.s32.totalorder %s178, %s192
      %p194 = scmp.eq.s32.totalorder %s37, 0
      %p195 = por %p193, %p194
      %s197 = sadd.s32 %s196, 1
      %p200 = scmp.eq.s32.totalorder %s31, 1
      %p201 = scmp.ne.s32.totalorder %s196, %s198
      %p202 = scmp.eq.s32.totalorder %s31, 0
      %p203 = por %p201, %p202
      %p204 = scmp.ne.s32.totalorder %s196, %s198
      %p205 = scmp.eq.s32.totalorder %s36, 1
      %p206 = por %p204, %p205
      %p207 = scmp.ne.s32.totalorder %s198, %s199
      %p208 = scmp.eq.s32.totalorder %s36, 0
      %p209 = por %p207, %p208
      %p210 = scmp.ne.s32.totalorder %s198, %s199
      %p211 = scmp.eq.s32.totalorder %s37, 1
      %p212 = por %p210, %p211
      %p214 = scmp.ne.s32.totalorder %s199, %s213
      %p215 = scmp.eq.s32.totalorder %s37, 0
      %p216 = por %p214, %p215
      %s218 = sadd.s32 %s217, 1
      %p221 = scmp.eq.s32.totalorder %s31, 1
      %p222 = scmp.ne.s32.totalorder %s217, %s219
      %p223 = scmp.eq.s32.totalorder %s31, 0
      %p224 = por %p222, %p223
      %p225 = scmp.ne.s32.totalorder %s217, %s219
      %p226 = scmp.eq.s32.totalorder %s36, 1
      %p227 = por %p225, %p226
      %p228 = scmp.ne.s32.totalorder %s219, %s220
      %p229 = scmp.eq.s32.totalorder %s36, 0
      %p230 = por %p228, %p229
      %p231 = scmp.ne.s32.totalorder %s219, %s220
      %p232 = scmp.eq.s32.totalorder %s37, 1
      %p233 = por %p231, %p232
      %p235 = scmp.ne.s32.totalorder %s220, %s234
      %p236 = scmp.eq.s32.totalorder %s37, 0
      %p237 = por %p235, %p236
      %s238 = ssub.s32 %s31, %s38
      %p239 = scmp.eq.s32.totalorder %s238, 0
      %s241 = sadd.s32 %s240, 1
      %s242 = scalar_select %p239, %s240, %s241
      %p245 = pneg %p239
      %p246 = scmp.eq.s32.totalorder %s31, 1
      %p247 = por %p245, %p246
      %p248 = scmp.ne.s32.totalorder %s240, %s243
      %p249 = scmp.eq.s32.totalorder %s31, 0
      %p250 = por %p248, %p249
      %p251 = scmp.ne.s32.totalorder %s240, %s243
      %p252 = scmp.eq.s32.totalorder %s36, 1
      %p253 = por %p251, %p252
      %p254 = scmp.ne.s32.totalorder %s243, %s244
      %p255 = scmp.eq.s32.totalorder %s36, 0
      %p256 = por %p254, %p255
      %p257 = scmp.ne.s32.totalorder %s243, %s244
      %p258 = scmp.eq.s32.totalorder %s37, 1
      %p259 = por %p257, %p258
      %p261 = scmp.ne.s32.totalorder %s244, %s260
      %p262 = scmp.eq.s32.totalorder %s37, 0
      %p263 = por %p261, %p262
      %s264 = ssub.s32 %s31, %s38
      %p265 = scmp.eq.s32.totalorder %s264, 0
      %s267 = sadd.s32 %s266, 1
      %s268 = scalar_select %p265, %s266, %s267
      %p271 = pneg %p265
      %p272 = scmp.eq.s32.totalorder %s31, 1
      %p273 = por %p271, %p272
      %p274 = scmp.ne.s32.totalorder %s266, %s269
      %p275 = scmp.eq.s32.totalorder %s31, 0
      %p276 = por %p274, %p275
      %p277 = scmp.ne.s32.totalorder %s266, %s269
      %p278 = scmp.eq.s32.totalorder %s36, 1
      %p279 = por %p277, %p278
      %p280 = scmp.ne.s32.totalorder %s269, %s270
      %p281 = scmp.eq.s32.totalorder %s36, 0
      %p282 = por %p280, %p281
      %p283 = scmp.ne.s32.totalorder %s269, %s270
      %p284 = scmp.eq.s32.totalorder %s37, 1
      %p285 = por %p283, %p284
      %p287 = scmp.ne.s32.totalorder %s270, %s286
      %p288 = scmp.eq.s32.totalorder %s37, 0
      %p289 = por %p287, %p288
      %p290 = scmp.le.s32.totalorder 1, %s31
      %p291 = scmp.lt.s32.totalorder %s31, 3
      %p292 = pnand %p290, %p291
      %p293 = pneg %p292
      // Predicated region
      $region9: #{tpu_custom_call.1} parent=5 // pred_check
        _
      $region10: #{tpu_custom_call.1} parent=5 // pred_check_branch
        %295 = sbr.rel (%p292) target = $region12
      $region11: #{tpu_custom_call.1} parent=5 // pred_region
        %s296 = ssub.s32 %s31, 1
        // Predicated region
        $region13: #{tpu_custom_call.1} parent=11 // pred_check
          %p297 = pneg %p104
        $region14: #{tpu_custom_call.1} parent=11 // pred_check_branch
          %299 = sbr.rel (%p297) target = $region16
        $region15: #{tpu_custom_call.1} parent=11 // pred_region
          %301 = vsyncadd [#allocation6], 0
          %s302 = sshll.u32 %s2, 4
          %s303 = int_to_ptr.hbm [resolvable:$true] %s302
          %s304 = sshll.u32 [#allocation7], 4
          %s305 = int_to_ptr.vmem [resolvable:$true] %s304
          %310 = dma.hbm_to_vmem [thread:$0]  %s303, 2048, %s305, [#allocation6], 128, 128, 8
        $region16: #{tpu_custom_call.1} parent=11 // pred_fallthru
          _
        // Predicated region
        $region17: #{tpu_custom_call.1} parent=11 // pred_check
          %p311 = pneg %p125
        $region18: #{tpu_custom_call.1} parent=11 // pred_check_branch
          %313 = sbr.rel (%p311) target = $region20
        $region19: #{tpu_custom_call.1} parent=11 // pred_region
          %315 = vsyncadd [#allocation9], 0
          %s316 = sshll.u32 %s3, 4
          %s317 = int_to_ptr.hbm [resolvable:$true] %s316
          %s318 = sshll.u32 [#allocation8], 4
          %s319 = int_to_ptr.vmem [resolvable:$true] %s318
          %324 = dma.hbm_to_vmem [thread:$0]  %s317, 2048, %s319, [#allocation9], 128, 128, 8
        $region20: #{tpu_custom_call.1} parent=11 // pred_fallthru
          _
        // Predicated region
        $region21: #{tpu_custom_call.1} parent=11 // pred_check
          %p325 = pneg %p146
        $region22: #{tpu_custom_call.1} parent=11 // pred_check_branch
          %327 = sbr.rel (%p325) target = $region24
        $region23: #{tpu_custom_call.1} parent=11 // pred_region
          %329 = vsyncadd [#allocation9], 0
          %s330 = sshll.u32 %s4, 4
          %s331 = int_to_ptr.hbm [resolvable:$true] %s330
          %s332 = sshll.u32 [#allocation10], 4
          %s333 = int_to_ptr.vmem [resolvable:$true] %s332
          %338 = dma.hbm_to_vmem [thread:$0]  %s331, 2048, %s333, [#allocation9], 128, 128, 8
        $region24: #{tpu_custom_call.1} parent=11 // pred_fallthru
          _
        // Predicated region
        $region25: #{tpu_custom_call.1} parent=11 // pred_check
          %p339 = pneg %p167
        $region26: #{tpu_custom_call.1} parent=11 // pred_check_branch
          %341 = sbr.rel (%p339) target = $region28
        $region27: #{tpu_custom_call.1} parent=11 // pred_region
          %343 = vsyncadd [#allocation12], 0
          %s345 = sshll.u32 %s5, 4
          %s346 = int_to_ptr.hbm [resolvable:$true] %s345
          %s347 = sshll.u32 [#allocation11], 4
          %s348 = int_to_ptr.vmem [resolvable:$true] %s347
          %350 = dma.hbm_to_vmem [thread:$0]  %s346, 128, %s348, [#allocation12]
        $region28: #{tpu_custom_call.1} parent=11 // pred_fallthru
          _
        // Predicated region
        $region29: #{tpu_custom_call.1} parent=11 // pred_check
          %p351 = pneg %p188
        $region30: #{tpu_custom_call.1} parent=11 // pred_check_branch
          %353 = sbr.rel (%p351) target = $region32
        $region31: #{tpu_custom_call.1} parent=11 // pred_region
          _
        $region32: #{tpu_custom_call.1} parent=11 // pred_fallthru
          _
        // Predicated region
        $region33: #{tpu_custom_call.1} parent=11 // pred_check
          %p354 = pneg %p209
        $region34: #{tpu_custom_call.1} parent=11 // pred_check_branch
          %356 = sbr.rel (%p354) target = $region36
        $region35: #{tpu_custom_call.1} parent=11 // pred_region
          %358 = vsyncadd [#allocation12], 0
          %s359 = sshll.u32 %s7, 4
          %s360 = int_to_ptr.hbm [resolvable:$true] %s359
          %s361 = sshll.u32 [#allocation13], 4
          %s362 = int_to_ptr.vmem [resolvable:$true] %s361
          %367 = dma.hbm_to_vmem [thread:$0]  %s360, 1024, %s362, [#allocation12], 64, 64, 4
        $region36: #{tpu_custom_call.1} parent=11 // pred_fallthru
          _
        // Predicated region
        $region37: #{tpu_custom_call.1} parent=11 // pred_check
          %p368 = pneg %p230
        $region38: #{tpu_custom_call.1} parent=11 // pred_check_branch
          %370 = sbr.rel (%p368) target = $region40
        $region39: #{tpu_custom_call.1} parent=11 // pred_region
          _
        $region40: #{tpu_custom_call.1} parent=11 // pred_fallthru
          _
      $region12: #{tpu_custom_call.1} parent=5 // pred_fallthru
        _
      %p371 = scmp.lt.s32.totalorder %s31, 2
      // Predicated region
      $region41: #{tpu_custom_call.1} parent=5 // pred_check
        %p372 = pneg %p371
      $region42: #{tpu_custom_call.1} parent=5 // pred_check_branch
        %374 = sbr.rel (%p372) target = $region44
      $region43: #{tpu_custom_call.1} parent=5 // pred_region
        // Predicated region
        $region45: #{tpu_custom_call.1} parent=43 // pred_check
          %p375 = pneg %p51
        $region46: #{tpu_custom_call.1} parent=43 // pred_check_branch
          %377 = sbr.rel (%p375) target = $region48
        $region47: #{tpu_custom_call.1} parent=43 // pred_region
          %s378 = sand.u32 %s41, 1
          %s379 = scalar_lea.sflag [#allocation3], %s378
          %s380 = sand.u32 %s41, 1
          %s381 = smul.addr %s380, 128
          %s382 = scalar_lea.vmem [#allocation2], %s381
          %s383 = smul.u32 2, %s31
          %385 = vsyncadd %s379, 0
          %s386 = smul.addr %s383, 16
          %s387 = smul.addr %s386, 4
          %s388 = scalar_lea.hbm %s0, %s387
          %s389 = sshll.u32 %s388, 4
          %s390 = int_to_ptr.hbm [resolvable:$true] %s389
          %s391 = sshll.u32 %s382, 4
          %s392 = int_to_ptr.vmem [resolvable:$true] %s391
          %397 = dma.hbm_to_vmem [thread:$0]  %s390, 2048, %s392, %s379, 64, 64, 4
        $region48: #{tpu_custom_call.1} parent=43 // pred_fallthru
          _
        // Predicated region
        $region49: #{tpu_custom_call.1} parent=43 // pred_check
          %p398 = pneg %p77
        $region50: #{tpu_custom_call.1} parent=43 // pred_check_branch
          %400 = sbr.rel (%p398) target = $region52
        $region51: #{tpu_custom_call.1} parent=43 // pred_region
          %s401 = sand.u32 %s31, 1
          %s402 = scalar_lea.sflag [#allocation6], %s401
          %s403 = sand.u32 %s67, 1
          %s404 = smul.addr %s403, 8
          %s405 = scalar_lea.vmem [#allocation5], %s404
          %s406 = smul.u32 2, %s31
          %408 = vsyncadd %s402, 0
          %s409 = smul.addr %s406, 4
          %s410 = scalar_lea.hbm %s1, %s409
          %s411 = sshll.u32 %s410, 4
          %s412 = int_to_ptr.hbm [resolvable:$true] %s411
          %s413 = sshll.u32 %s405, 4
          %s414 = int_to_ptr.vmem [resolvable:$true] %s413
          %419 = dma.hbm_to_vmem [thread:$0]  %s412, 128, %s414, %s402, 64, 64, 4
        $region52: #{tpu_custom_call.1} parent=43 // pred_fallthru
          _
      $region44: #{tpu_custom_call.1} parent=5 // pred_fallthru
        _
      %p420 = scmp.le.s32.totalorder 1, %s31
      %p421 = scmp.lt.s32.totalorder %s31, 3
      %p422 = pnand %p420, %p421
      %p423 = pneg %p422
      // Predicated region
      $region53: #{tpu_custom_call.1} parent=5 // pred_check
        _
      $region54: #{tpu_custom_call.1} parent=5 // pred_check_branch
        %425 = sbr.rel (%p422) target = $region56
      $region55: #{tpu_custom_call.1} parent=5 // pred_region
        %s426 = ssub.s32 %s31, 1
        %s427 = sand.u32 %s44, 1
        %s428 = scalar_lea.sflag [#allocation3], %s427
        %s429 = sand.u32 %s44, 1
        %s430 = smul.addr %s429, 128
        %s431 = scalar_lea.vmem [#allocation2], %s430
        // Predicated region
        $region57: #{tpu_custom_call.1} parent=55 // pred_check
          %p432 = pneg %p57
        $region58: #{tpu_custom_call.1} parent=55 // pred_check_branch
          %434 = sbr.rel (%p432) target = $region60
        $region59: #{tpu_custom_call.1} parent=55 // pred_region
          %436 = dma.done %s428, 2048
        $region60: #{tpu_custom_call.1} parent=55 // pred_fallthru
          _
        %s437 = sand.u32 %s36, 1
        %s438 = scalar_lea.sflag [#allocation6], %s437
        %s439 = sand.u32 %s70, 1
        %s440 = smul.addr %s439, 8
        %s441 = scalar_lea.vmem [#allocation5], %s440
        // Predicated region
        $region61: #{tpu_custom_call.1} parent=55 // pred_check
          %p442 = pneg %p83
        $region62: #{tpu_custom_call.1} parent=55 // pred_check_branch
          %444 = sbr.rel (%p442) target = $region64
        $region63: #{tpu_custom_call.1} parent=55 // pred_region
          %446 = dma.done %s438, 128
        $region64: #{tpu_custom_call.1} parent=55 // pred_fallthru
          _
        // Predicated region
        $region65: #{tpu_custom_call.1} parent=55 // pred_check
          %p447 = pneg %p104
        $region66: #{tpu_custom_call.1} parent=55 // pred_check_branch
          %449 = sbr.rel (%p447) target = $region68
        $region67: #{tpu_custom_call.1} parent=55 // pred_region
          %451 = dma.done [#allocation6], 2048
        $region68: #{tpu_custom_call.1} parent=55 // pred_fallthru
          _
        // Predicated region
        $region69: #{tpu_custom_call.1} parent=55 // pred_check
          %p452 = pneg %p125
        $region70: #{tpu_custom_call.1} parent=55 // pred_check_branch
          %454 = sbr.rel (%p452) target = $region72
        $region71: #{tpu_custom_call.1} parent=55 // pred_region
          %456 = dma.done [#allocation9], 2048
        $region72: #{tpu_custom_call.1} parent=55 // pred_fallthru
          _
        // Predicated region
        $region73: #{tpu_custom_call.1} parent=55 // pred_check
          %p457 = pneg %p146
        $region74: #{tpu_custom_call.1} parent=55 // pred_check_branch
          %459 = sbr.rel (%p457) target = $region76
        $region75: #{tpu_custom_call.1} parent=55 // pred_region
          %461 = dma.done [#allocation9], 2048
        $region76: #{tpu_custom_call.1} parent=55 // pred_fallthru
          _
        // Predicated region
        $region77: #{tpu_custom_call.1} parent=55 // pred_check
          %p462 = pneg %p167
        $region78: #{tpu_custom_call.1} parent=55 // pred_check_branch
          %464 = sbr.rel (%p462) target = $region80
        $region79: #{tpu_custom_call.1} parent=55 // pred_region
          %466 = dma.done [#allocation12], 128
        $region80: #{tpu_custom_call.1} parent=55 // pred_fallthru
          _
        // Predicated region
        $region81: #{tpu_custom_call.1} parent=55 // pred_check
          %p467 = pneg %p209
        $region82: #{tpu_custom_call.1} parent=55 // pred_check_branch
          %469 = sbr.rel (%p467) target = $region84
        $region83: #{tpu_custom_call.1} parent=55 // pred_region
          %471 = dma.done [#allocation12], 1024
        $region84: #{tpu_custom_call.1} parent=55 // pred_fallthru
          _
        %s472 = sand.u32 %s44, 1
        %s473 = scalar_lea.sflag [#allocation3], %s472
        %s474 = sand.u32 %s44, 1
        %s475 = smul.addr %s474, 128
        %s476 = scalar_lea.vmem [#allocation2], %s475
        %p477 = pneg %p57
        %p478 = pneg %p54
        %s479 = sand.u32 %s36, 1
        %s480 = scalar_lea.sflag [#allocation6], %s479
        %s481 = sand.u32 %s70, 1
        %s482 = smul.addr %s481, 8
        %s483 = scalar_lea.vmem [#allocation5], %s482
        %p484 = pneg %p83
        %p485 = pneg %p80
        %p486 = pneg %p104
        %p487 = pneg %p101
        %p488 = pneg %p125
        %p489 = pneg %p122
        %p490 = pneg %p146
        %p491 = pneg %p143
        %p492 = pneg %p167
        %p493 = pneg %p164
        %p494 = pneg %p188
        %p495 = pneg %p185
        %p496 = pneg %p209
        %p497 = pneg %p206
        %p498 = pneg %p230
        %p499 = pneg %p227
        %p500 = pneg %p256
        %p501 = pneg %p253
        %s502 = sand.u32 %s243, 1
        %s503 = scalar_lea.sflag [#allocation4], %s502
        %s504 = sand.u32 %s243, 1
        %s505 = smul.addr %s504, 32
        %s506 = scalar_lea.vmem [#allocation14], %s505
        %p507 = pneg %p282
        %p508 = pneg %p279
        %s509 = sand.u32 %s269, 1
        %s510 = scalar_lea.sflag [#allocation16], %s509
        %s511 = sand.u32 %s269, 1
        %s512 = smul.addr %s511, 2
        %s513 = scalar_lea.vmem [#allocation15], %s512
        %s514 = smul.u32 2, %s36
        %s515 = smul.u32 2, %s36
        %s516 = smul.u32 2, %s36
        %s517 = smul.u32 2, %s36
        %v518 = vld [vmem:[%s431] sm:$0xf]
        %v519 = vld [vmem:[%s431 + $0x4] sm:$0xf]
        %v520 = vld [vmem:[%s431 + $0x8] sm:$0xf]
        %v521 = vld [vmem:[%s431 + $0xc] sm:$0xf]
        %v522 = vld [vmem:[%s431 + $0x10] sm:$0xf]
        %v523 = vld [vmem:[%s431 + $0x14] sm:$0xf]
        %v524 = vld [vmem:[%s431 + $0x18] sm:$0xf]
        %v525 = vld [vmem:[%s431 + $0x1c] sm:$0xf]
        %v526 = vld [vmem:[%s431 + $0x20] sm:$0xf]
        %v527 = vld [vmem:[%s431 + $0x24] sm:$0xf]
        %v528 = vld [vmem:[%s431 + $0x28] sm:$0xf]
        %v529 = vld [vmem:[%s431 + $0x2c] sm:$0xf]
        %v530 = vld [vmem:[%s431 + $0x30] sm:$0xf]
        %v531 = vld [vmem:[%s431 + $0x34] sm:$0xf]
        %v532 = vld [vmem:[%s431 + $0x38] sm:$0xf]
        %v533 = vld [vmem:[%s431 + $0x3c] sm:$0xf]
        %v534 = vld [vmem:[%s431 + $0x40] sm:$0xf]
        %v535 = vld [vmem:[%s431 + $0x44] sm:$0xf]
        %v536 = vld [vmem:[%s431 + $0x48] sm:$0xf]
        %v537 = vld [vmem:[%s431 + $0x4c] sm:$0xf]
        %v538 = vld [vmem:[%s431 + $0x50] sm:$0xf]
        %v539 = vld [vmem:[%s431 + $0x54] sm:$0xf]
        %v540 = vld [vmem:[%s431 + $0x58] sm:$0xf]
        %v541 = vld [vmem:[%s431 + $0x5c] sm:$0xf]
        %v542 = vld [vmem:[%s431 + $0x60] sm:$0xf]
        %v543 = vld [vmem:[%s431 + $0x64] sm:$0xf]
        %v544 = vld [vmem:[%s431 + $0x68] sm:$0xf]
        %v545 = vld [vmem:[%s431 + $0x6c] sm:$0xf]
        %v546 = vld [vmem:[%s431 + $0x70] sm:$0xf]
        %v547 = vld [vmem:[%s431 + $0x74] sm:$0xf]
        %v548 = vld [vmem:[%s431 + $0x78] sm:$0xf]
        %v549 = vld [vmem:[%s431 + $0x7c] sm:$0xf]
        %v550 = vld [vmem:[#allocation7] sm:$0xff]
        %v551 = vld [vmem:[#allocation7 + $0x8] sm:$0xff]
        %v552 = vld [vmem:[#allocation7 + $0x10] sm:$0xff]
        %v553 = vld [vmem:[#allocation7 + $0x18] sm:$0xff]
        %v554 = vld [vmem:[#allocation7 + $0x20] sm:$0xff]
        %v555 = vld [vmem:[#allocation7 + $0x28] sm:$0xff]
        %v556 = vld [vmem:[#allocation7 + $0x30] sm:$0xff]
        %v557 = vld [vmem:[#allocation7 + $0x38] sm:$0xff]
        %v558 = vld [vmem:[#allocation7 + $0x40] sm:$0xff]
        %v559 = vld [vmem:[#allocation7 + $0x48] sm:$0xff]
        %v560 = vld [vmem:[#allocation7 + $0x50] sm:$0xff]
        %v561 = vld [vmem:[#allocation7 + $0x58] sm:$0xff]
        %v562 = vld [vmem:[#allocation7 + $0x60] sm:$0xff]
        %v563 = vld [vmem:[#allocation7 + $0x68] sm:$0xff]
        %v564 = vld [vmem:[#allocation7 + $0x70] sm:$0xff]
        %v565 = vld [vmem:[#allocation7 + $0x78] sm:$0xff]
        %v598 = vunpack.c.l.b16 %v518
        %v599 = vunpack.c.l.b16 %v519
        %v600 = vunpack.c.l.b16 %v520
        %v601 = vunpack.c.l.b16 %v521
        %v602 = vunpack.c.l.b16 %v522
        %v603 = vunpack.c.l.b16 %v523
        %v604 = vunpack.c.l.b16 %v524
        %v605 = vunpack.c.l.b16 %v525
        %v606 = vunpack.c.l.b16 %v526
        %v607 = vunpack.c.l.b16 %v527
        %v608 = vunpack.c.l.b16 %v528
        %v609 = vunpack.c.l.b16 %v529
        %v610 = vunpack.c.l.b16 %v530
        %v611 = vunpack.c.l.b16 %v531
        %v612 = vunpack.c.l.b16 %v532
        %v613 = vunpack.c.l.b16 %v533
        %v614 = vunpack.c.l.b16 %v534
        %v615 = vunpack.c.l.b16 %v535
        %v616 = vunpack.c.l.b16 %v536
        %v617 = vunpack.c.l.b16 %v537
        %v618 = vunpack.c.l.b16 %v538
        %v619 = vunpack.c.l.b16 %v539
        %v620 = vunpack.c.l.b16 %v540
        %v621 = vunpack.c.l.b16 %v541
        %v622 = vunpack.c.l.b16 %v542
        %v623 = vunpack.c.l.b16 %v543
        %v624 = vunpack.c.l.b16 %v544
        %v625 = vunpack.c.l.b16 %v545
        %v626 = vunpack.c.l.b16 %v546
        %v627 = vunpack.c.l.b16 %v547
        %v628 = vunpack.c.l.b16 %v548
        %v629 = vunpack.c.l.b16 %v549
        %v630 = vpack.c.b16 %v599, %v598
        %v631 = vpack.c.b16 %v601, %v600
        %v632 = vpack.c.b16 %v603, %v602
        %v633 = vpack.c.b16 %v605, %v604
        %v634 = vpack.c.b16 %v607, %v606
        %v635 = vpack.c.b16 %v609, %v608
        %v636 = vpack.c.b16 %v611, %v610
        %v637 = vpack.c.b16 %v613, %v612
        %v638 = vpack.c.b16 %v615, %v614
        %v639 = vpack.c.b16 %v617, %v616
        %v640 = vpack.c.b16 %v619, %v618
        %v641 = vpack.c.b16 %v621, %v620
        %v642 = vpack.c.b16 %v623, %v622
        %v643 = vpack.c.b16 %v625, %v624
        %v644 = vpack.c.b16 %v627, %v626
        %v645 = vpack.c.b16 %v629, %v628
        %v678 = vunpack.c.l.b16 %v550
        %v679 = vunpack.c.h.b16 %v550
        %v680 = vunpack.c.l.b16 %v551
        %v681 = vunpack.c.h.b16 %v551
        %v682 = vunpack.c.l.b16 %v552
        %v683 = vunpack.c.h.b16 %v552
        %v684 = vunpack.c.l.b16 %v553
        %v685 = vunpack.c.h.b16 %v553
        %v686 = vunpack.c.l.b16 %v554
        %v687 = vunpack.c.h.b16 %v554
        %v688 = vunpack.c.l.b16 %v555
        %v689 = vunpack.c.h.b16 %v555
        %v690 = vunpack.c.l.b16 %v556
        %v691 = vunpack.c.h.b16 %v556
        %v692 = vunpack.c.l.b16 %v557
        %v693 = vunpack.c.h.b16 %v557
        %v694 = vunpack.c.l.b16 %v558
        %v695 = vunpack.c.h.b16 %v558
        %v696 = vunpack.c.l.b16 %v559
        %v697 = vunpack.c.h.b16 %v559
        %v698 = vunpack.c.l.b16 %v560
        %v699 = vunpack.c.h.b16 %v560
        %v700 = vunpack.c.l.b16 %v561
        %v701 = vunpack.c.h.b16 %v561
        %v702 = vunpack.c.l.b16 %v562
        %v703 = vunpack.c.h.b16 %v562
        %v704 = vunpack.c.l.b16 %v563
        %v705 = vunpack.c.h.b16 %v563
        %v706 = vunpack.c.l.b16 %v564
        %v707 = vunpack.c.h.b16 %v564
        %v708 = vunpack.c.l.b16 %v565
        %v709 = vunpack.c.h.b16 %v565
        %v710 = vpack.c.b16 %v680, %v678
        %v711 = vpack.c.b16 %v681, %v679
        %v712 = vpack.c.b16 %v684, %v682
        %v713 = vpack.c.b16 %v685, %v683
        %v714 = vpack.c.b16 %v688, %v686
        %v715 = vpack.c.b16 %v689, %v687
        %v716 = vpack.c.b16 %v692, %v690
        %v717 = vpack.c.b16 %v693, %v691
        %v718 = vpack.c.b16 %v696, %v694
        %v719 = vpack.c.b16 %v697, %v695
        %v720 = vpack.c.b16 %v700, %v698
        %v721 = vpack.c.b16 %v701, %v699
        %v722 = vpack.c.b16 %v704, %v702
        %v723 = vpack.c.b16 %v705, %v703
        %v724 = vpack.c.b16 %v708, %v706
        %v725 = vpack.c.b16 %v709, %v707
        %742 = vmatpush.bf16.msra.mxu0 %v724
        %743 = vmatpush.bf16.msra.mxu0 %v722
        %744 = vmatpush.bf16.msra.mxu0 %v720
        %745 = vmatpush.bf16.msra.mxu0 %v718
        %746 = vmatpush.bf16.msra.mxu0 %v716
        %747 = vmatpush.bf16.msra.mxu0 %v714
        %748 = vmatpush.bf16.msra.mxu0 %v712
        %749 = vmatpush.bf16.msra.mxu0 %v710
        %750 = vmatmul.bf16.gmra.mxu0 %v630
        %v751 = vpop.f32.mrf.mxu0
        %v752 = vadd.f32 0.0, %v751
        %v753 = vpop.f32.mrf.mxu0
        %v754 = vadd.f32 0.0, %v753
        %755 = vmatmul.bf16.gmra.mxu0 %v631
        %v756 = vpop.f32.mrf.mxu0
        %v757 = vadd.f32 0.0, %v756
        %v758 = vpop.f32.mrf.mxu0
        %v759 = vadd.f32 0.0, %v758
        %760 = vmatmul.bf16.gmra.mxu0 %v632
        %v761 = vpop.f32.mrf.mxu0
        %v762 = vadd.f32 0.0, %v761
        %v763 = vpop.f32.mrf.mxu0
        %v764 = vadd.f32 0.0, %v763
        %765 = vmatmul.bf16.gmra.mxu0 %v633
        %v766 = vpop.f32.mrf.mxu0
        %v767 = vadd.f32 0.0, %v766
        %v768 = vpop.f32.mrf.mxu0
        %v769 = vadd.f32 0.0, %v768
        %770 = vmatmul.bf16.gmra.mxu0 %v634
        %v771 = vpop.f32.mrf.mxu0
        %v772 = vadd.f32 0.0, %v771
        %v773 = vpop.f32.mrf.mxu0
        %v774 = vadd.f32 0.0, %v773
        %775 = vmatmul.bf16.gmra.mxu0 %v635
        %v776 = vpop.f32.mrf.mxu0
        %v777 = vadd.f32 0.0, %v776
        %v778 = vpop.f32.mrf.mxu0
        %v779 = vadd.f32 0.0, %v778
        %780 = vmatmul.bf16.gmra.mxu0 %v636
        %v781 = vpop.f32.mrf.mxu0
        %v782 = vadd.f32 0.0, %v781
        %v783 = vpop.f32.mrf.mxu0
        %v784 = vadd.f32 0.0, %v783
        %785 = vmatmul.bf16.gmra.mxu0 %v637
        %v786 = vpop.f32.mrf.mxu0
        %v787 = vadd.f32 0.0, %v786
        %v788 = vpop.f32.mrf.mxu0
        %v789 = vadd.f32 0.0, %v788
        %790 = vmatmul.bf16.gmra.mxu0 %v638
        %v791 = vpop.f32.mrf.mxu0
        %v792 = vadd.f32 0.0, %v791
        %v793 = vpop.f32.mrf.mxu0
        %v794 = vadd.f32 0.0, %v793
        %795 = vmatmul.bf16.gmra.mxu0 %v639
        %v796 = vpop.f32.mrf.mxu0
        %v797 = vadd.f32 0.0, %v796
        %v798 = vpop.f32.mrf.mxu0
        %v799 = vadd.f32 0.0, %v798
        %800 = vmatmul.bf16.gmra.mxu0 %v640
        %v801 = vpop.f32.mrf.mxu0
        %v802 = vadd.f32 0.0, %v801
        %v803 = vpop.f32.mrf.mxu0
        %v804 = vadd.f32 0.0, %v803
        %805 = vmatmul.bf16.gmra.mxu0 %v641
        %v806 = vpop.f32.mrf.mxu0
        %v807 = vadd.f32 0.0, %v806
        %v808 = vpop.f32.mrf.mxu0
        %v809 = vadd.f32 0.0, %v808
        %810 = vmatmul.bf16.gmra.mxu0 %v642
        %v811 = vpop.f32.mrf.mxu0
        %v812 = vadd.f32 0.0, %v811
        %v813 = vpop.f32.mrf.mxu0
        %v814 = vadd.f32 0.0, %v813
        %815 = vmatmul.bf16.gmra.mxu0 %v643
        %v816 = vpop.f32.mrf.mxu0
        %v817 = vadd.f32 0.0, %v816
        %v818 = vpop.f32.mrf.mxu0
        %v819 = vadd.f32 0.0, %v818
        %820 = vmatmul.bf16.gmra.mxu0 %v644
        %v821 = vpop.f32.mrf.mxu0
        %v822 = vadd.f32 0.0, %v821
        %v823 = vpop.f32.mrf.mxu0
        %v824 = vadd.f32 0.0, %v823
        %825 = vmatmul.bf16.gmra.mxu0 %v645
        %v826 = vpop.f32.mrf.mxu0
        %v827 = vadd.f32 0.0, %v826
        %v828 = vpop.f32.mrf.mxu0
        %v829 = vadd.f32 0.0, %v828
        %830 = vdwg.mxu0
        %831 = vmatpush.bf16.msra.mxu0 %v725
        %832 = vmatpush.bf16.msra.mxu0 %v723
        %833 = vmatpush.bf16.msra.mxu0 %v721
        %834 = vmatpush.bf16.msra.mxu0 %v719
        %835 = vmatpush.bf16.msra.mxu0 %v717
        %836 = vmatpush.bf16.msra.mxu0 %v715
        %837 = vmatpush.bf16.msra.mxu0 %v713
        %838 = vmatpush.bf16.msra.mxu0 %v711
        %839 = vmatmul.bf16.gmra.mxu0 %v630
        %v840 = vpop.f32.mrf.mxu0
        %v841 = vadd.f32 0.0, %v840
        %v842 = vpop.f32.mrf.mxu0
        %v843 = vadd.f32 0.0, %v842
        %844 = vmatmul.bf16.gmra.mxu0 %v631
        %v845 = vpop.f32.mrf.mxu0
        %v846 = vadd.f32 0.0, %v845
        %v847 = vpop.f32.mrf.mxu0
        %v848 = vadd.f32 0.0, %v847
        %849 = vmatmul.bf16.gmra.mxu0 %v632
        %v850 = vpop.f32.mrf.mxu0
        %v851 = vadd.f32 0.0, %v850
        %v852 = vpop.f32.mrf.mxu0
        %v853 = vadd.f32 0.0, %v852
        %854 = vmatmul.bf16.gmra.mxu0 %v633
        %v855 = vpop.f32.mrf.mxu0
        %v856 = vadd.f32 0.0, %v855
        %v857 = vpop.f32.mrf.mxu0
        %v858 = vadd.f32 0.0, %v857
        %859 = vmatmul.bf16.gmra.mxu0 %v634
        %v860 = vpop.f32.mrf.mxu0
        %v861 = vadd.f32 0.0, %v860
        %v862 = vpop.f32.mrf.mxu0
        %v863 = vadd.f32 0.0, %v862
        %864 = vmatmul.bf16.gmra.mxu0 %v635
        %v865 = vpop.f32.mrf.mxu0
        %v866 = vadd.f32 0.0, %v865
        %v867 = vpop.f32.mrf.mxu0
        %v868 = vadd.f32 0.0, %v867
        %869 = vmatmul.bf16.gmra.mxu0 %v636
        %v870 = vpop.f32.mrf.mxu0
        %v871 = vadd.f32 0.0, %v870
        %v872 = vpop.f32.mrf.mxu0
        %v873 = vadd.f32 0.0, %v872
        %874 = vmatmul.bf16.gmra.mxu0 %v637
        %v875 = vpop.f32.mrf.mxu0
        %v876 = vadd.f32 0.0, %v875
        %v877 = vpop.f32.mrf.mxu0
        %v878 = vadd.f32 0.0, %v877
        %879 = vmatmul.bf16.gmra.mxu0 %v638
        %v880 = vpop.f32.mrf.mxu0
        %v881 = vadd.f32 0.0, %v880
        %v882 = vpop.f32.mrf.mxu0
        %v883 = vadd.f32 0.0, %v882
        %884 = vmatmul.bf16.gmra.mxu0 %v639
        %v885 = vpop.f32.mrf.mxu0
        %v886 = vadd.f32 0.0, %v885
        %v887 = vpop.f32.mrf.mxu0
        %v888 = vadd.f32 0.0, %v887
        %889 = vmatmul.bf16.gmra.mxu0 %v640
        %v890 = vpop.f32.mrf.mxu0
        %v891 = vadd.f32 0.0, %v890
        %v892 = vpop.f32.mrf.mxu0
        %v893 = vadd.f32 0.0, %v892
        %894 = vmatmul.bf16.gmra.mxu0 %v641
        %v895 = vpop.f32.mrf.mxu0
        %v896 = vadd.f32 0.0, %v895
        %v897 = vpop.f32.mrf.mxu0
        %v898 = vadd.f32 0.0, %v897
        %899 = vmatmul.bf16.gmra.mxu0 %v642
        %v900 = vpop.f32.mrf.mxu0
        %v901 = vadd.f32 0.0, %v900
        %v902 = vpop.f32.mrf.mxu0
        %v903 = vadd.f32 0.0, %v902
        %904 = vmatmul.bf16.gmra.mxu0 %v643
        %v905 = vpop.f32.mrf.mxu0
        %v906 = vadd.f32 0.0, %v905
        %v907 = vpop.f32.mrf.mxu0
        %v908 = vadd.f32 0.0, %v907
        %909 = vmatmul.bf16.gmra.mxu0 %v644
        %v910 = vpop.f32.mrf.mxu0
        %v911 = vadd.f32 0.0, %v910
        %v912 = vpop.f32.mrf.mxu0
        %v913 = vadd.f32 0.0, %v912
        %914 = vmatmul.bf16.gmra.mxu0 %v645
        %v915 = vpop.f32.mrf.mxu0
        %v916 = vadd.f32 0.0, %v915
        %v917 = vpop.f32.mrf.mxu0
        %v918 = vadd.f32 0.0, %v917
        %919 = vdwg.mxu0
        %v920 = vld [vmem:[#allocation8] sm:$0xff]
        %v921 = vld [vmem:[#allocation8 + $0x8] sm:$0xff]
        %v922 = vld [vmem:[#allocation8 + $0x10] sm:$0xff]
        %v923 = vld [vmem:[#allocation8 + $0x18] sm:$0xff]
        %v924 = vld [vmem:[#allocation8 + $0x20] sm:$0xff]
        %v925 = vld [vmem:[#allocation8 + $0x28] sm:$0xff]
        %v926 = vld [vmem:[#allocation8 + $0x30] sm:$0xff]
        %v927 = vld [vmem:[#allocation8 + $0x38] sm:$0xff]
        %v928 = vld [vmem:[#allocation8 + $0x40] sm:$0xff]
        %v929 = vld [vmem:[#allocation8 + $0x48] sm:$0xff]
        %v930 = vld [vmem:[#allocation8 + $0x50] sm:$0xff]
        %v931 = vld [vmem:[#allocation8 + $0x58] sm:$0xff]
        %v932 = vld [vmem:[#allocation8 + $0x60] sm:$0xff]
        %v933 = vld [vmem:[#allocation8 + $0x68] sm:$0xff]
        %v934 = vld [vmem:[#allocation8 + $0x70] sm:$0xff]
        %v935 = vld [vmem:[#allocation8 + $0x78] sm:$0xff]
        %v936 = vunpack.c.l.bf16 %v920
        %v937 = vunpack.c.h.bf16 %v920
        %v938 = vunpack.c.l.bf16 %v921
        %v939 = vunpack.c.h.bf16 %v921
        %v940 = vunpack.c.l.bf16 %v922
        %v941 = vunpack.c.h.bf16 %v922
        %v942 = vunpack.c.l.bf16 %v923
        %v943 = vunpack.c.h.bf16 %v923
        %v944 = vunpack.c.l.bf16 %v924
        %v945 = vunpack.c.h.bf16 %v924
        %v946 = vunpack.c.l.bf16 %v925
        %v947 = vunpack.c.h.bf16 %v925
        %v948 = vunpack.c.l.bf16 %v926
        %v949 = vunpack.c.h.bf16 %v926
        %v950 = vunpack.c.l.bf16 %v927
        %v951 = vunpack.c.h.bf16 %v927
        %v952 = vunpack.c.l.bf16 %v928
        %v953 = vunpack.c.h.bf16 %v928
        %v954 = vunpack.c.l.bf16 %v929
        %v955 = vunpack.c.h.bf16 %v929
        %v956 = vunpack.c.l.bf16 %v930
        %v957 = vunpack.c.h.bf16 %v930
        %v958 = vunpack.c.l.bf16 %v931
        %v959 = vunpack.c.h.bf16 %v931
        %v960 = vunpack.c.l.bf16 %v932
        %v961 = vunpack.c.h.bf16 %v932
        %v962 = vunpack.c.l.bf16 %v933
        %v963 = vunpack.c.h.bf16 %v933
        %v964 = vunpack.c.l.bf16 %v934
        %v965 = vunpack.c.h.bf16 %v934
        %v966 = vunpack.c.l.bf16 %v935
        %v967 = vunpack.c.h.bf16 %v935
        %v968 = vadd.f32 %v752, %v936
        %v969 = vadd.f32 %v841, %v937
        %v970 = vadd.f32 %v754, %v938
        %v971 = vadd.f32 %v843, %v939
        %v972 = vadd.f32 %v757, %v940
        %v973 = vadd.f32 %v846, %v941
        %v974 = vadd.f32 %v759, %v942
        %v975 = vadd.f32 %v848, %v943
        %v976 = vadd.f32 %v762, %v944
        %v977 = vadd.f32 %v851, %v945
        %v978 = vadd.f32 %v764, %v946
        %v979 = vadd.f32 %v853, %v947
        %v980 = vadd.f32 %v767, %v948
        %v981 = vadd.f32 %v856, %v949
        %v982 = vadd.f32 %v769, %v950
        %v983 = vadd.f32 %v858, %v951
        %v984 = vadd.f32 %v772, %v952
        %v985 = vadd.f32 %v861, %v953
        %v986 = vadd.f32 %v774, %v954
        %v987 = vadd.f32 %v863, %v955
        %v988 = vadd.f32 %v777, %v956
        %v989 = vadd.f32 %v866, %v957
        %v990 = vadd.f32 %v779, %v958
        %v991 = vadd.f32 %v868, %v959
        %v992 = vadd.f32 %v782, %v960
        %v993 = vadd.f32 %v871, %v961
        %v994 = vadd.f32 %v784, %v962
        %v995 = vadd.f32 %v873, %v963
        %v996 = vadd.f32 %v787, %v964
        %v997 = vadd.f32 %v876, %v965
        %v998 = vadd.f32 %v789, %v966
        %v999 = vadd.f32 %v878, %v967
        %v1000 = vadd.f32 %v792, %v936
        %v1001 = vadd.f32 %v881, %v937
        %v1002 = vadd.f32 %v794, %v938
        %v1003 = vadd.f32 %v883, %v939
        %v1004 = vadd.f32 %v797, %v940
        %v1005 = vadd.f32 %v886, %v941
        %v1006 = vadd.f32 %v799, %v942
        %v1007 = vadd.f32 %v888, %v943
        %v1008 = vadd.f32 %v802, %v944
        %v1009 = vadd.f32 %v891, %v945
        %v1010 = vadd.f32 %v804, %v946
        %v1011 = vadd.f32 %v893, %v947
        %v1012 = vadd.f32 %v807, %v948
        %v1013 = vadd.f32 %v896, %v949
        %v1014 = vadd.f32 %v809, %v950
        %v1015 = vadd.f32 %v898, %v951
        %v1016 = vadd.f32 %v812, %v952
        %v1017 = vadd.f32 %v901, %v953
        %v1018 = vadd.f32 %v814, %v954
        %v1019 = vadd.f32 %v903, %v955
        %v1020 = vadd.f32 %v817, %v956
        %v1021 = vadd.f32 %v906, %v957
        %v1022 = vadd.f32 %v819, %v958
        %v1023 = vadd.f32 %v908, %v959
        %v1024 = vadd.f32 %v822, %v960
        %v1025 = vadd.f32 %v911, %v961
        %v1026 = vadd.f32 %v824, %v962
        %v1027 = vadd.f32 %v913, %v963
        %v1028 = vadd.f32 %v827, %v964
        %v1029 = vadd.f32 %v916, %v965
        %v1030 = vadd.f32 %v829, %v966
        %v1031 = vadd.f32 %v918, %v967
        %v1032 = vmax.f32 %v968, 0.0
        %v1033 = vmax.f32 %v969, 0.0
        %v1034 = vmax.f32 %v970, 0.0
        %v1035 = vmax.f32 %v971, 0.0
        %v1036 = vmax.f32 %v972, 0.0
        %v1037 = vmax.f32 %v973, 0.0
        %v1038 = vmax.f32 %v974, 0.0
        %v1039 = vmax.f32 %v975, 0.0
        %v1040 = vmax.f32 %v976, 0.0
        %v1041 = vmax.f32 %v977, 0.0
        %v1042 = vmax.f32 %v978, 0.0
        %v1043 = vmax.f32 %v979, 0.0
        %v1044 = vmax.f32 %v980, 0.0
        %v1045 = vmax.f32 %v981, 0.0
        %v1046 = vmax.f32 %v982, 0.0
        %v1047 = vmax.f32 %v983, 0.0
        %v1048 = vmax.f32 %v984, 0.0
        %v1049 = vmax.f32 %v985, 0.0
        %v1050 = vmax.f32 %v986, 0.0
        %v1051 = vmax.f32 %v987, 0.0
        %v1052 = vmax.f32 %v988, 0.0
        %v1053 = vmax.f32 %v989, 0.0
        %v1054 = vmax.f32 %v990, 0.0
        %v1055 = vmax.f32 %v991, 0.0
        %v1056 = vmax.f32 %v992, 0.0
        %v1057 = vmax.f32 %v993, 0.0
        %v1058 = vmax.f32 %v994, 0.0
        %v1059 = vmax.f32 %v995, 0.0
        %v1060 = vmax.f32 %v996, 0.0
        %v1061 = vmax.f32 %v997, 0.0
        %v1062 = vmax.f32 %v998, 0.0
        %v1063 = vmax.f32 %v999, 0.0
        %v1064 = vmax.f32 %v1000, 0.0
        %v1065 = vmax.f32 %v1001, 0.0
        %v1066 = vmax.f32 %v1002, 0.0
        %v1067 = vmax.f32 %v1003, 0.0
        %v1068 = vmax.f32 %v1004, 0.0
        %v1069 = vmax.f32 %v1005, 0.0
        %v1070 = vmax.f32 %v1006, 0.0
        %v1071 = vmax.f32 %v1007, 0.0
        %v1072 = vmax.f32 %v1008, 0.0
        %v1073 = vmax.f32 %v1009, 0.0
        %v1074 = vmax.f32 %v1010, 0.0
        %v1075 = vmax.f32 %v1011, 0.0
        %v1076 = vmax.f32 %v1012, 0.0
        %v1077 = vmax.f32 %v1013, 0.0
        %v1078 = vmax.f32 %v1014, 0.0
        %v1079 = vmax.f32 %v1015, 0.0
        %v1080 = vmax.f32 %v1016, 0.0
        %v1081 = vmax.f32 %v1017, 0.0
        %v1082 = vmax.f32 %v1018, 0.0
        %v1083 = vmax.f32 %v1019, 0.0
        %v1084 = vmax.f32 %v1020, 0.0
        %v1085 = vmax.f32 %v1021, 0.0
        %v1086 = vmax.f32 %v1022, 0.0
        %v1087 = vmax.f32 %v1023, 0.0
        %v1088 = vmax.f32 %v1024, 0.0
        %v1089 = vmax.f32 %v1025, 0.0
        %v1090 = vmax.f32 %v1026, 0.0
        %v1091 = vmax.f32 %v1027, 0.0
        %v1092 = vmax.f32 %v1028, 0.0
        %v1093 = vmax.f32 %v1029, 0.0
        %v1094 = vmax.f32 %v1030, 0.0
        %v1095 = vmax.f32 %v1031, 0.0
        %v1096 = vld [vmem:[%s441] sm:$0xf]
        %v1097 = vld [vmem:[%s441 + $0x4] sm:$0xf]
        %v1098 = vld [vmem:[#allocation10] sm:$0xff]
        %v1099 = vld [vmem:[#allocation10 + $0x8] sm:$0xff]
        %v1100 = vld [vmem:[#allocation10 + $0x10] sm:$0xff]
        %v1101 = vld [vmem:[#allocation10 + $0x18] sm:$0xff]
        %v1102 = vld [vmem:[#allocation10 + $0x20] sm:$0xff]
        %v1103 = vld [vmem:[#allocation10 + $0x28] sm:$0xff]
        %v1104 = vld [vmem:[#allocation10 + $0x30] sm:$0xff]
        %v1105 = vld [vmem:[#allocation10 + $0x38] sm:$0xff]
        %v1106 = vld [vmem:[#allocation10 + $0x40] sm:$0xff]
        %v1107 = vld [vmem:[#allocation10 + $0x48] sm:$0xff]
        %v1108 = vld [vmem:[#allocation10 + $0x50] sm:$0xff]
        %v1109 = vld [vmem:[#allocation10 + $0x58] sm:$0xff]
        %v1110 = vld [vmem:[#allocation10 + $0x60] sm:$0xff]
        %v1111 = vld [vmem:[#allocation10 + $0x68] sm:$0xff]
        %v1112 = vld [vmem:[#allocation10 + $0x70] sm:$0xff]
        %v1113 = vld [vmem:[#allocation10 + $0x78] sm:$0xff]
        %v1116 = vunpack.c.l.b16 %v1096
        %v1117 = vunpack.c.l.b16 %v1097
        %v1118 = vpack.c.b16 %v1117, %v1116
        %v1136 = vunpack.c.l.b16 %v1098
        %v1137 = vunpack.c.h.b16 %v1098
        %v1138 = vunpack.c.l.b16 %v1099
        %v1139 = vunpack.c.h.b16 %v1099
        %v1140 = vunpack.c.l.b16 %v1100
        %v1141 = vunpack.c.h.b16 %v1100
        %v1142 = vunpack.c.l.b16 %v1101
        %v1143 = vunpack.c.h.b16 %v1101
        %v1144 = vunpack.c.l.b16 %v1102
        %v1145 = vunpack.c.h.b16 %v1102
        %v1146 = vunpack.c.l.b16 %v1103
        %v1147 = vunpack.c.h.b16 %v1103
        %v1148 = vunpack.c.l.b16 %v1104
        %v1149 = vunpack.c.h.b16 %v1104
        %v1150 = vunpack.c.l.b16 %v1105
        %v1151 = vunpack.c.h.b16 %v1105
        %v1152 = vunpack.c.l.b16 %v1106
        %v1153 = vunpack.c.h.b16 %v1106
        %v1154 = vunpack.c.l.b16 %v1107
        %v1155 = vunpack.c.h.b16 %v1107
        %v1156 = vunpack.c.l.b16 %v1108
        %v1157 = vunpack.c.h.b16 %v1108
        %v1158 = vunpack.c.l.b16 %v1109
        %v1159 = vunpack.c.h.b16 %v1109
        %v1160 = vunpack.c.l.b16 %v1110
        %v1161 = vunpack.c.h.b16 %v1110
        %v1162 = vunpack.c.l.b16 %v1111
        %v1163 = vunpack.c.h.b16 %v1111
        %v1164 = vunpack.c.l.b16 %v1112
        %v1165 = vunpack.c.h.b16 %v1112
        %v1166 = vunpack.c.l.b16 %v1113
        %v1167 = vunpack.c.h.b16 %v1113
        %v1168 = vpack.c.b16 %v1138, %v1136
        %v1169 = vpack.c.b16 %v1139, %v1137
        %v1170 = vpack.c.b16 %v1142, %v1140
        %v1171 = vpack.c.b16 %v1143, %v1141
        %v1172 = vpack.c.b16 %v1146, %v1144
        %v1173 = vpack.c.b16 %v1147, %v1145
        %v1174 = vpack.c.b16 %v1150, %v1148
        %v1175 = vpack.c.b16 %v1151, %v1149
        %v1176 = vpack.c.b16 %v1154, %v1152
        %v1177 = vpack.c.b16 %v1155, %v1153
        %v1178 = vpack.c.b16 %v1158, %v1156
        %v1179 = vpack.c.b16 %v1159, %v1157
        %v1180 = vpack.c.b16 %v1162, %v1160
        %v1181 = vpack.c.b16 %v1163, %v1161
        %v1182 = vpack.c.b16 %v1166, %v1164
        %v1183 = vpack.c.b16 %v1167, %v1165
        %1200 = vmatpush.bf16.msra.mxu0 %v1182
        %1201 = vmatpush.bf16.msra.mxu0 %v1180
        %1202 = vmatpush.bf16.msra.mxu0 %v1178
        %1203 = vmatpush.bf16.msra.mxu0 %v1176
        %1204 = vmatpush.bf16.msra.mxu0 %v1174
        %1205 = vmatpush.bf16.msra.mxu0 %v1172
        %1206 = vmatpush.bf16.msra.mxu0 %v1170
        %1207 = vmatpush.bf16.msra.mxu0 %v1168
        %1208 = vmatmul.bf16.gmra.mxu0 %v1118
        %v1209 = vpop.f32.mrf.mxu0
        %v1210 = vadd.f32 0.0, %v1209
        %v1211 = vpop.f32.mrf.mxu0
        %v1212 = vadd.f32 0.0, %v1211
        %1213 = vdwg.mxu0
        %1214 = vmatpush.bf16.msra.mxu0 %v1183
        %1215 = vmatpush.bf16.msra.mxu0 %v1181
        %1216 = vmatpush.bf16.msra.mxu0 %v1179
        %1217 = vmatpush.bf16.msra.mxu0 %v1177
        %1218 = vmatpush.bf16.msra.mxu0 %v1175
        %1219 = vmatpush.bf16.msra.mxu0 %v1173
        %1220 = vmatpush.bf16.msra.mxu0 %v1171
        %1221 = vmatpush.bf16.msra.mxu0 %v1169
        %1222 = vmatmul.bf16.gmra.mxu0 %v1118
        %v1223 = vpop.f32.mrf.mxu0
        %v1224 = vadd.f32 0.0, %v1223
        %v1225 = vpop.f32.mrf.mxu0
        %v1226 = vadd.f32 0.0, %v1225
        %1227 = vdwg.mxu0
        %v1228 = vld [vmem:[#allocation11] sm:$0xff]
        %v1229 = vunpack.c.l.bf16 %v1228
        %v1230 = vunpack.c.h.bf16 %v1228
        %v1231 = vadd.f32 %v1210, %v1229
        %v1232 = vadd.f32 %v1224, %v1230
        %v1233 = vadd.f32 %v1212, %v1229
        %v1234 = vadd.f32 %v1226, %v1230
        %v1235 = vmax.f32 %v1231, 0.0
        %v1236 = vmax.f32 %v1232, 0.0
        %v1237 = vmax.f32 %v1233, 0.0
        %v1238 = vmax.f32 %v1234, 0.0
        %v1239 = vld [vmem:[%s6] sm:$0x3]
        %v1240 = vunpack.c.l.bf16 %v1239
        %v1241 = vld [vmem:[#allocation13] sm:$0xf]
        %v1242 = vld [vmem:[#allocation13 + $0x4] sm:$0xf]
        %v1243 = vld [vmem:[#allocation13 + $0x8] sm:$0xf]
        %v1244 = vld [vmem:[#allocation13 + $0xc] sm:$0xf]
        %v1245 = vld [vmem:[#allocation13 + $0x10] sm:$0xf]
        %v1246 = vld [vmem:[#allocation13 + $0x14] sm:$0xf]
        %v1247 = vld [vmem:[#allocation13 + $0x18] sm:$0xf]
        %v1248 = vld [vmem:[#allocation13 + $0x1c] sm:$0xf]
        %v1249 = vld [vmem:[#allocation13 + $0x20] sm:$0xf]
        %v1250 = vld [vmem:[#allocation13 + $0x24] sm:$0xf]
        %v1251 = vld [vmem:[#allocation13 + $0x28] sm:$0xf]
        %v1252 = vld [vmem:[#allocation13 + $0x2c] sm:$0xf]
        %v1253 = vld [vmem:[#allocation13 + $0x30] sm:$0xf]
        %v1254 = vld [vmem:[#allocation13 + $0x34] sm:$0xf]
        %v1255 = vld [vmem:[#allocation13 + $0x38] sm:$0xf]
        %v1256 = vld [vmem:[#allocation13 + $0x3c] sm:$0xf]
        %v1257 = vunpack.c.l.bf16 %v1241
        %v1258 = vunpack.c.l.bf16 %v1242
        %v1259 = vunpack.c.l.bf16 %v1243
        %v1260 = vunpack.c.l.bf16 %v1244
        %v1261 = vunpack.c.l.bf16 %v1245
        %v1262 = vunpack.c.l.bf16 %v1246
        %v1263 = vunpack.c.l.bf16 %v1247
        %v1264 = vunpack.c.l.bf16 %v1248
        %v1265 = vunpack.c.l.bf16 %v1249
        %v1266 = vunpack.c.l.bf16 %v1250
        %v1267 = vunpack.c.l.bf16 %v1251
        %v1268 = vunpack.c.l.bf16 %v1252
        %v1269 = vunpack.c.l.bf16 %v1253
        %v1270 = vunpack.c.l.bf16 %v1254
        %v1271 = vunpack.c.l.bf16 %v1255
        %v1272 = vunpack.c.l.bf16 %v1256
        %v1273 = vld [vmem:[%s8] sm:$0x1]
        %v1274 = vld [vmem:[%s8 + $0x1] sm:$0x1]
        %v1276 = vrot.slane %v1240, 3
        %vm1277 = vcmask 1040384
        %v1278 = vsel %vm1277, %v1240, %v1276
        %vm1279 = vcmask 1041409
        %v1280 = vsel %vm1279, %v1240, %v1276
        %v1281 = vrot.slane %v1280, 1
        %vm1282 = vcmask 1042434
        %v1283 = vsel %vm1282, %v1240, %v1276
        %v1284 = vrot.slane %v1283, 2
        %vm1285 = vcmask 1043459
        %v1286 = vsel %vm1285, %v1240, %v1276
        %v1287 = vrot.slane %v1286, 3
        %v1288 = vperm.slane %v1278, 0
        %v1289 = vperm.slane %v1281, 0
        %v1290 = vperm.slane %v1284, 0
        %v1291 = vperm.slane %v1287, 0
        %v1296 = vmul.f32 %v1288, %v1235
        %v1297 = vmul.f32 %v1289, %v1235
        %v1298 = vmul.f32 %v1290, %v1235
        %v1299 = vmul.f32 %v1291, %v1235
        %v1300 = vpack.c.bf16 %v1296, %v1296
        %v1301 = vpack.c.bf16 %v1297, %v1297
        %v1302 = vpack.c.bf16 %v1298, %v1298
        %v1303 = vpack.c.bf16 %v1299, %v1299
        %v1304 = vpack.c.bf16 %v1034, %v1032
        %v1305 = vpack.c.bf16 %v1038, %v1036
        %v1306 = vpack.c.bf16 %v1042, %v1040
        %v1307 = vpack.c.bf16 %v1046, %v1044
        %v1308 = vpack.c.bf16 %v1050, %v1048
        %v1309 = vpack.c.bf16 %v1054, %v1052
        %v1310 = vpack.c.bf16 %v1058, %v1056
        %v1311 = vpack.c.bf16 %v1062, %v1060
        %v1316 = vunpack.c.l.b16 %v1300
        %v1317 = vunpack.c.l.b16 %v1301
        %v1318 = vunpack.c.l.b16 %v1302
        %v1319 = vunpack.c.l.b16 %v1303
        %v1320 = vpack.c.b16 %v1317, %v1316
        %v1321 = vpack.c.b16 %v1319, %v1318
        %1324 = vmatpush.bf16.xpose.msra.mxu0 %v1311
        %1325 = vmatpush.bf16.xpose.msra.mxu0 %v1310
        %1326 = vmatpush.bf16.xpose.msra.mxu0 %v1309
        %1327 = vmatpush.bf16.xpose.msra.mxu0 %v1308
        %1328 = vmatpush.bf16.xpose.msra.mxu0 %v1307
        %1329 = vmatpush.bf16.xpose.msra.mxu0 %v1306
        %1330 = vmatpush.bf16.xpose.msra.mxu0 %v1305
        %1331 = vmatpush.bf16.xpose.msra.mxu0 %v1304
        %1332 = vmatmul.bf16.gmra.mxu0 %v1320
        %v1333 = vpop.f32.mrf.mxu0
        %v1334 = vadd.f32 0.0, %v1333
        %v1335 = vpop.f32.mrf.mxu0
        %v1336 = vadd.f32 0.0, %v1335
        %1337 = vmatmul.bf16.gmra.mxu0 %v1321
        %v1338 = vpop.f32.mrf.mxu0
        %v1339 = vadd.f32 0.0, %v1338
        %v1340 = vpop.f32.mrf.mxu0
        %v1341 = vadd.f32 0.0, %v1340
        %1342 = vdwg.mxu0
        %v1343 = vpack.c.bf16 %v1334, %v1334
        %v1344 = vpack.c.bf16 %v1336, %v1336
        %v1345 = vpack.c.bf16 %v1339, %v1339
        %v1346 = vpack.c.bf16 %v1341, %v1341
        %1347 = vst [vmem:[%s506] sm:$0xf] %v1343
        %1348 = vst [vmem:[%s506 + $0x4] sm:$0xf] %v1344
        %1349 = vst [vmem:[%s506 + $0x8] sm:$0xf] %v1345
        %1350 = vst [vmem:[%s506 + $0xc] sm:$0xf] %v1346
        %v1352 = vperm.slane %v1273, 0
        %v1354 = vmul.f32 %v1235, %v1352
        %1355 = vmatpush.xpose.msra.mxu0 %v1062
        %1356 = vmatpush.xpose.msra.mxu0 %v1060
        %1357 = vmatpush.xpose.msra.mxu0 %v1058
        %1358 = vmatpush.xpose.msra.mxu0 %v1056
        %1359 = vmatpush.xpose.msra.mxu0 %v1054
        %1360 = vmatpush.xpose.msra.mxu0 %v1052
        %1361 = vmatpush.xpose.msra.mxu0 %v1050
        %1362 = vmatpush.xpose.msra.mxu0 %v1048
        %1363 = vmatpush.xpose.msra.mxu0 %v1046
        %1364 = vmatpush.xpose.msra.mxu0 %v1044
        %1365 = vmatpush.xpose.msra.mxu0 %v1042
        %1366 = vmatpush.xpose.msra.mxu0 %v1040
        %1367 = vmatpush.xpose.msra.mxu0 %v1038
        %1368 = vmatpush.xpose.msra.mxu0 %v1036
        %1369 = vmatpush.xpose.msra.mxu0 %v1034
        %1370 = vmatpush.xpose.msra.mxu0 %v1032
        %1371 = vmatmul.f32.gmra.mxu0 %v1354
        %v1372 = vpop.f32.mrf.mxu0
        %v1373 = vadd.f32 0.0, %v1372
        %1374 = vdwg.mxu0
        %1375 = vmatpush.msra.mxu0 %v1063
        %1376 = vmatpush.msra.mxu0 %v1061
        %1377 = vmatpush.msra.mxu0 %v1059
        %1378 = vmatpush.msra.mxu0 %v1057
        %1379 = vmatpush.msra.mxu0 %v1055
        %1380 = vmatpush.msra.mxu0 %v1053
        %1381 = vmatpush.msra.mxu0 %v1051
        %1382 = vmatpush.msra.mxu0 %v1049
        %1383 = vmatpush.msra.mxu0 %v1047
        %1384 = vmatpush.msra.mxu0 %v1045
        %1385 = vmatpush.msra.mxu0 %v1043
        %1386 = vmatpush.msra.mxu0 %v1041
        %1387 = vmatpush.msra.mxu0 %v1039
        %1388 = vmatpush.msra.mxu0 %v1037
        %1389 = vmatpush.msra.mxu0 %v1035
        %1390 = vmatpush.msra.mxu0 %v1033
        %1391 = vmatmul.f32.gmra.mxu0 %v1373
        %v1392 = vpop.f32.mrf.mxu0
        %v1393 = vadd.f32 0.0, %v1392
        %1394 = vdwg.mxu0
        %v1395 = vmul.f32 %v1236, %v1393
        %v1396 = vrot.slane %v1395, 4
        %v1397 = vadd.f32 %v1395, %v1396
        %v1398 = vrot.slane %v1397, 2
        %v1399 = vadd.f32 %v1397, %v1398
        %v1400 = vrot.slane %v1399, 1
        %v1401 = vadd.f32 %v1399, %v1400
        %1402 = vmatpush.msra.mxu0 %v1272
        %1403 = vmatpush.msra.mxu0 %v1271
        %1404 = vmatpush.msra.mxu0 %v1270
        %1405 = vmatpush.msra.mxu0 %v1269
        %1406 = vmatpush.msra.mxu0 %v1268
        %1407 = vmatpush.msra.mxu0 %v1267
        %1408 = vmatpush.msra.mxu0 %v1266
        %1409 = vmatpush.msra.mxu0 %v1265
        %1410 = vmatpush.msra.mxu0 %v1264
        %1411 = vmatpush.msra.mxu0 %v1263
        %1412 = vmatpush.msra.mxu0 %v1262
        %1413 = vmatpush.msra.mxu0 %v1261
        %1414 = vmatpush.msra.mxu0 %v1260
        %1415 = vmatpush.msra.mxu0 %v1259
        %1416 = vmatpush.msra.mxu0 %v1258
        %1417 = vmatpush.msra.mxu0 %v1257
        %1418 = vmatmul.f32.gmra.mxu0 %v1401
        %v1419 = vpop.f32.mrf.mxu0
        %v1420 = vadd.f32 %v1274, %v1419
        %1421 = vdwg.mxu0
        %1422 = vst [vmem:[%s513] sm:$0x1] %v1420
        %v1423 = vmul.f32 %v1288, %v1237
        %v1424 = vmul.f32 %v1289, %v1237
        %v1425 = vmul.f32 %v1290, %v1237
        %v1426 = vmul.f32 %v1291, %v1237
        %v1427 = vpack.c.bf16 %v1423, %v1423
        %v1428 = vpack.c.bf16 %v1424, %v1424
        %v1429 = vpack.c.bf16 %v1425, %v1425
        %v1430 = vpack.c.bf16 %v1426, %v1426
        %v1431 = vpack.c.bf16 %v1066, %v1064
        %v1432 = vpack.c.bf16 %v1070, %v1068
        %v1433 = vpack.c.bf16 %v1074, %v1072
        %v1434 = vpack.c.bf16 %v1078, %v1076
        %v1435 = vpack.c.bf16 %v1082, %v1080
        %v1436 = vpack.c.bf16 %v1086, %v1084
        %v1437 = vpack.c.bf16 %v1090, %v1088
        %v1438 = vpack.c.bf16 %v1094, %v1092
        %v1443 = vunpack.c.l.b16 %v1427
        %v1444 = vunpack.c.l.b16 %v1428
        %v1445 = vunpack.c.l.b16 %v1429
        %v1446 = vunpack.c.l.b16 %v1430
        %v1447 = vpack.c.b16 %v1444, %v1443
        %v1448 = vpack.c.b16 %v1446, %v1445
        %1451 = vmatpush.bf16.xpose.msra.mxu0 %v1438
        %1452 = vmatpush.bf16.xpose.msra.mxu0 %v1437
        %1453 = vmatpush.bf16.xpose.msra.mxu0 %v1436
        %1454 = vmatpush.bf16.xpose.msra.mxu0 %v1435
        %1455 = vmatpush.bf16.xpose.msra.mxu0 %v1434
        %1456 = vmatpush.bf16.xpose.msra.mxu0 %v1433
        %1457 = vmatpush.bf16.xpose.msra.mxu0 %v1432
        %1458 = vmatpush.bf16.xpose.msra.mxu0 %v1431
        %1459 = vmatmul.bf16.gmra.mxu0 %v1447
        %v1460 = vpop.f32.mrf.mxu0
        %v1461 = vadd.f32 0.0, %v1460
        %v1462 = vpop.f32.mrf.mxu0
        %v1463 = vadd.f32 0.0, %v1462
        %1464 = vmatmul.bf16.gmra.mxu0 %v1448
        %v1465 = vpop.f32.mrf.mxu0
        %v1466 = vadd.f32 0.0, %v1465
        %v1467 = vpop.f32.mrf.mxu0
        %v1468 = vadd.f32 0.0, %v1467
        %1469 = vdwg.mxu0
        %v1470 = vpack.c.bf16 %v1461, %v1461
        %v1471 = vpack.c.bf16 %v1463, %v1463
        %v1472 = vpack.c.bf16 %v1466, %v1466
        %v1473 = vpack.c.bf16 %v1468, %v1468
        %s1474 = scalar_lea.vmem %s506, 16 [#allocation14]
        %1475 = vst [vmem:[%s1474] sm:$0xf] %v1470
        %1476 = vst [vmem:[%s1474 + $0x4] sm:$0xf] %v1471
        %1477 = vst [vmem:[%s1474 + $0x8] sm:$0xf] %v1472
        %1478 = vst [vmem:[%s1474 + $0xc] sm:$0xf] %v1473
        %v1479 = vmul.f32 %v1237, %v1352
        %1480 = vmatpush.xpose.msra.mxu0 %v1094
        %1481 = vmatpush.xpose.msra.mxu0 %v1092
        %1482 = vmatpush.xpose.msra.mxu0 %v1090
        %1483 = vmatpush.xpose.msra.mxu0 %v1088
        %1484 = vmatpush.xpose.msra.mxu0 %v1086
        %1485 = vmatpush.xpose.msra.mxu0 %v1084
        %1486 = vmatpush.xpose.msra.mxu0 %v1082
        %1487 = vmatpush.xpose.msra.mxu0 %v1080
        %1488 = vmatpush.xpose.msra.mxu0 %v1078
        %1489 = vmatpush.xpose.msra.mxu0 %v1076
        %1490 = vmatpush.xpose.msra.mxu0 %v1074
        %1491 = vmatpush.xpose.msra.mxu0 %v1072
        %1492 = vmatpush.xpose.msra.mxu0 %v1070
        %1493 = vmatpush.xpose.msra.mxu0 %v1068
        %1494 = vmatpush.xpose.msra.mxu0 %v1066
        %1495 = vmatpush.xpose.msra.mxu0 %v1064
        %1496 = vmatmul.f32.gmra.mxu0 %v1479
        %v1497 = vpop.f32.mrf.mxu0
        %v1498 = vadd.f32 0.0, %v1497
        %1499 = vdwg.mxu0
        %1500 = vmatpush.msra.mxu0 %v1095
        %1501 = vmatpush.msra.mxu0 %v1093
        %1502 = vmatpush.msra.mxu0 %v1091
        %1503 = vmatpush.msra.mxu0 %v1089
        %1504 = vmatpush.msra.mxu0 %v1087
        %1505 = vmatpush.msra.mxu0 %v1085
        %1506 = vmatpush.msra.mxu0 %v1083
        %1507 = vmatpush.msra.mxu0 %v1081
        %1508 = vmatpush.msra.mxu0 %v1079
        %1509 = vmatpush.msra.mxu0 %v1077
        %1510 = vmatpush.msra.mxu0 %v1075
        %1511 = vmatpush.msra.mxu0 %v1073
        %1512 = vmatpush.msra.mxu0 %v1071
        %1513 = vmatpush.msra.mxu0 %v1069
        %1514 = vmatpush.msra.mxu0 %v1067
        %1515 = vmatpush.msra.mxu0 %v1065
        %1516 = vmatmul.f32.gmra.mxu0 %v1498
        %v1517 = vpop.f32.mrf.mxu0
        %v1518 = vadd.f32 0.0, %v1517
        %1519 = vdwg.mxu0
        %v1520 = vmul.f32 %v1238, %v1518
        %v1521 = vrot.slane %v1520, 4
        %v1522 = vadd.f32 %v1520, %v1521
        %v1523 = vrot.slane %v1522, 2
        %v1524 = vadd.f32 %v1522, %v1523
        %v1525 = vrot.slane %v1524, 1
        %v1526 = vadd.f32 %v1524, %v1525
        %1527 = vmatpush.msra.mxu0 %v1272
        %1528 = vmatpush.msra.mxu0 %v1271
        %1529 = vmatpush.msra.mxu0 %v1270
        %1530 = vmatpush.msra.mxu0 %v1269
        %1531 = vmatpush.msra.mxu0 %v1268
        %1532 = vmatpush.msra.mxu0 %v1267
        %1533 = vmatpush.msra.mxu0 %v1266
        %1534 = vmatpush.msra.mxu0 %v1265
        %1535 = vmatpush.msra.mxu0 %v1264
        %1536 = vmatpush.msra.mxu0 %v1263
        %1537 = vmatpush.msra.mxu0 %v1262
        %1538 = vmatpush.msra.mxu0 %v1261
        %1539 = vmatpush.msra.mxu0 %v1260
        %1540 = vmatpush.msra.mxu0 %v1259
        %1541 = vmatpush.msra.mxu0 %v1258
        %1542 = vmatpush.msra.mxu0 %v1257
        %1543 = vmatmul.f32.gmra.mxu0 %v1526
        %v1544 = vpop.f32.mrf.mxu0
        %v1545 = vadd.f32 %v1274, %v1544
        %1546 = vdwg.mxu0
        %s1547 = scalar_lea.vmem %s513, 1 [#allocation15]
        %1548 = vst [vmem:[%s1547] sm:$0x1] %v1545
        %s1549 = sand.u32 %s243, 1
        %s1550 = scalar_lea.sflag [#allocation4], %s1549
        %s1551 = sand.u32 %s243, 1
        %s1552 = smul.addr %s1551, 32
        %s1553 = scalar_lea.vmem [#allocation14], %s1552
        %s1554 = sand.u32 %s269, 1
        %s1555 = scalar_lea.sflag [#allocation16], %s1554
        %s1556 = sand.u32 %s269, 1
        %s1557 = smul.addr %s1556, 2
        %s1558 = scalar_lea.vmem [#allocation15], %s1557
        // Predicated region
        $region85: #{tpu_custom_call.1} parent=55 // pred_check
          %p1559 = pneg %p253
        $region86: #{tpu_custom_call.1} parent=55 // pred_check_branch
          %1561 = sbr.rel (%p1559) target = $region88
        $region87: #{tpu_custom_call.1} parent=55 // pred_region
          %s1562 = smul.u32 2, %s36
          %1564 = vsyncadd %s1550, 0
          %s1565 = smul.addr %s1562, 4
          %s1566 = smul.addr %s1565, 4
          %s1567 = scalar_lea.hbm %s9, %s1566
          %s1568 = sshll.u32 %s1553, 4
          %s1569 = int_to_ptr.vmem [resolvable:$true] %s1568
          %s1570 = sshll.u32 %s1567, 4
          %s1571 = int_to_ptr.hbm [resolvable:$true] %s1570
          %1576 = dma.vmem_to_hbm [thread:$0]  %s1569, 512, %s1571, %s1550, 64, 64, 4
        $region88: #{tpu_custom_call.1} parent=55 // pred_fallthru
          _
        // Predicated region
        $region89: #{tpu_custom_call.1} parent=55 // pred_check
          %p1577 = pneg %p279
        $region90: #{tpu_custom_call.1} parent=55 // pred_check_branch
          %1579 = sbr.rel (%p1577) target = $region92
        $region91: #{tpu_custom_call.1} parent=55 // pred_region
          %s1580 = smul.u32 2, %s36
          %1582 = vsyncadd %s1555, 0
          %s1583 = scalar_lea.hbm %s10, %s1580
          %s1584 = sshll.u32 %s1558, 4
          %s1585 = int_to_ptr.vmem [resolvable:$true] %s1584
          %s1586 = sshll.u32 %s1583, 4
          %s1587 = int_to_ptr.hbm [resolvable:$true] %s1586
          %1592 = dma.vmem_to_hbm [thread:$0]  %s1585, 32, %s1587, %s1555, 16, 16, 1
        $region92: #{tpu_custom_call.1} parent=55 // pred_fallthru
          _
      $region56: #{tpu_custom_call.1} parent=5 // pred_fallthru
        _
      %p1593 = scmp.le.s32.totalorder 2, %s31
      // Predicated region
      $region93: #{tpu_custom_call.1} parent=5 // pred_check
        %p1594 = pneg %p1593
      $region94: #{tpu_custom_call.1} parent=5 // pred_check_branch
        %1596 = sbr.rel (%p1594) target = $region96
      $region95: #{tpu_custom_call.1} parent=5 // pred_region
        %s1597 = ssub.s32 %s31, 2
        // Predicated region
        $region97: #{tpu_custom_call.1} parent=95 // pred_check
          %p1598 = pneg %p259
        $region98: #{tpu_custom_call.1} parent=95 // pred_check_branch
          %1600 = sbr.rel (%p1598) target = $region100
        $region99: #{tpu_custom_call.1} parent=95 // pred_region
          %s1601 = sand.u32 %s244, 1
          %s1602 = scalar_lea.sflag [#allocation4], %s1601
          %s1603 = sand.u32 %s244, 1
          %s1604 = smul.addr %s1603, 32
          %s1605 = scalar_lea.vmem [#allocation14], %s1604
          %1607 = dma.done %s1602, 512
        $region100: #{tpu_custom_call.1} parent=95 // pred_fallthru
          _
        // Predicated region
        $region101: #{tpu_custom_call.1} parent=95 // pred_check
          %p1608 = pneg %p285
        $region102: #{tpu_custom_call.1} parent=95 // pred_check_branch
          %1610 = sbr.rel (%p1608) target = $region104
        $region103: #{tpu_custom_call.1} parent=95 // pred_region
          %s1611 = sand.u32 %s270, 1
          %s1612 = scalar_lea.sflag [#allocation16], %s1611
          %s1613 = sand.u32 %s270, 1
          %s1614 = smul.addr %s1613, 2
          %s1615 = scalar_lea.vmem [#allocation15], %s1614
          %1617 = dma.done %s1612, 32
        $region104: #{tpu_custom_call.1} parent=95 // pred_fallthru
          _
      $region96: #{tpu_custom_call.1} parent=5 // pred_fallthru
        _
    $region6: #{tpu_custom_call.1} parent=1 // loop_footer
      %s35 = sadd.s32 1, %s31
    $region7: #{tpu_custom_call.1} parent=1 // loop_footer_branch
      %30 = sbr.rel target = $region3
    $region8: #{tpu_custom_call.1} parent=1 // loop_exit
      _
    %1618 = vsyncpa [#allocation3], 1
    %s1619 = scalar_lea.sflag [#allocation3], 1
    %1620 = vsyncpa %s1619, 1
    %1621 = vsyncpa [#allocation6], 1
    %s1622 = scalar_lea.sflag [#allocation6], 1
    %1623 = vsyncpa %s1622, 1
    %1624 = vsyncpa [#allocation9], 1
    %1625 = vsyncpa [#allocation12], 1
    %1626 = vsyncpa [#allocation4], 1
    %s1627 = scalar_lea.sflag [#allocation4], 1
    %1628 = vsyncpa %s1627, 1
    %1629 = vsyncpa [#allocation16], 1
    %s1630 = scalar_lea.sflag [#allocation16], 1
    %1631 = vsyncpa %s1630, 1

</llo_original>
